<compile_context>
chip_gen: v7x
topology: tpu7x:2x2x1
jax: 0.10.0
libtpu: 0.0.40
codegen_flags: <defaults>
</compile_context>

<pallas_src>
import functools

import jax
import jax.numpy as jnp
import numpy as np
from jax.experimental import pallas as pl
from jax.experimental.pallas import tpu as pltpu


def _round_up(x, m):
    return (x + m - 1) // m * m


def _multibox_loss_kernel(conf_ref, ploc_ref, gloc_ref, lab_sub_ref,
                          lab_lane_ref, out_ref, *, neg_pos_ratio, p_valid):
    conf = conf_ref[...]                       # (Bt, P, C) f32, natural layout
    bt, pp, nc = conf.shape

    # In-kernel transpose to the lane-dense layout (classes on sublanes,
    # priors on the 128-lane axis).  This replaces the old wrapper-side XLA
    # transpose (a full HBM read+write of the tensor) with VMEM-local XLU
    # work overlapped with the DMA pipeline.
    conf_t = jnp.transpose(conf, (0, 2, 1))    # (Bt, C, P)
    lab_lane = lab_lane_ref[...]               # (Bt, 1, P) int32

    # ---- log-softmax pieces; log_probs / z are never materialized ----
    m = jnp.max(conf_t, axis=1, keepdims=True)                      # (Bt, 1, P)
    sumexp = jnp.sum(jnp.exp(conf_t - m), axis=1, keepdims=True)    # (Bt, 1, P)
    lse = m + jnp.log(sumexp)                  # full logsumexp       (Bt, 1, P)

    cls_iota = jax.lax.broadcasted_iota(jnp.int32, (bt, nc, pp), 1)
    picked = jnp.sum(jnp.where(cls_iota == lab_lane, conf_t, 0.0),
                     axis=1, keepdims=True)    # conf at target class (Bt, 1, P)
    ce = lse - picked                          # cross-entropy / prior
    bg = lse - conf_t[:, 0:1, :]               # -log p(background) >= 0

    # ---- masks (padded lanes excluded via static p_valid) ----
    prior_iota = jax.lax.broadcasted_iota(jnp.int32, (bt, 1, pp), 2)
    valid = prior_iota < p_valid                                    # (Bt, 1, P)
    pos = (lab_lane > 0) & valid                                    # (Bt, 1, P)
    num_pos = jnp.sum(pos.astype(jnp.int32), axis=2, keepdims=True)  # (Bt,1,1)
    num_neg = num_pos * neg_pos_ratio
    num_neg_eff = jnp.clip(num_neg, 1, p_valid)

    # ---- hard-negative mining (box_utils.hard_negative_mining) ----
    # bg >= 0, so its bit pattern is a monotone non-negative int32 key.
    # Positives and padded lanes are pinned to -1 so they rank last.
    key = pltpu.bitcast(bg, jnp.int32)
    key = jnp.where(pos | jnp.logical_not(valid), jnp.int32(-1), key)

    # Vectorized bisection (across the Bt rows at once) for the num_neg-th
    # largest key.  Keys are < 0x7F800001, so 31 halvings pin the threshold
    # exactly.  Fully unrolled: the carries stay in vregs, no scalar
    # round-trip, and the lane reduce of one pass overlaps the next compare.
    lo = jnp.zeros((bt, 1, 1), jnp.int32)
    hi = jnp.full((bt, 1, 1), jnp.int32(0x7F800001))
    for _ in range(31):
        mid = lo + ((hi - lo) >> 1)
        cnt = jnp.sum((key >= mid).astype(jnp.int32), axis=2, keepdims=True)
        ok = cnt >= num_neg_eff
        lo = jnp.where(ok, mid, lo)
        hi = jnp.where(ok, hi, mid)
    kth = lo                                   # (Bt, 1, 1)

    # Ties at the threshold are all included (the reference sort is unstable,
    # so tie handling at the boundary is unspecified in the original).
    neg = (key >= kth) & (num_neg > 0)
    mask = pos | neg                                                # (Bt, 1, P)
    cls_sum = jnp.sum(jnp.where(mask, ce, 0.0))

    # ---- smooth L1 over positive priors, in the natural (Bt, P, 4) layout ----
    pos_sub = lab_sub_ref[...] > 0             # (Bt, P, 1); padded entries are 0
    d = jnp.abs(ploc_ref[...] - gloc_ref[...])
    sl1 = jnp.where(d < 1.0, 0.5 * d * d, d - 0.5)
    sl1_sum = jnp.sum(jnp.where(pos_sub, sl1, 0.0))

    npos_f = jnp.sum(num_pos).astype(jnp.float32)

    # Lane-dense per-block partials: lane0 = smooth-L1 sum, lane1 = CE sum,
    # lane2 = num_pos.  No cross-step state -> batch axis can be "parallel".
    lane = jax.lax.broadcasted_iota(jnp.int32, out_ref.shape, 1)
    out_ref[...] = (jnp.where(lane == 0, sl1_sum, 0.0) +
                    jnp.where(lane == 1, cls_sum, 0.0) +
                    jnp.where(lane == 2, npos_f, 0.0))


def multibox_loss(confidence, predicted_locations, labels, gt_locations,
                  neg_pos_ratio=3, batch_block=None):
    """Returns (smooth_l1_loss / num_pos, classification_loss / num_pos)."""
    B, P, C = confidence.shape
    P_pad = _round_up(P, 128)

    if batch_block is None:
        # ~4 MiB of inputs per grid step (double-buffered by BlockSpec); this
        # stays inside v5e's 16 MiB scoped-VMEM default even with the in-kernel
        # (Bt, C, P) temporaries.
        row_bytes = (C + 4 + 4 + 1 + 1) * P_pad * 4
        batch_block = max(1, min(B, 16, (4 << 20) // max(row_bytes, 1)))
    Bt = int(batch_block)
    B_pad = _round_up(B, Bt)
    nblk = B_pad // Bt

    conf = confidence.astype(jnp.float32)
    ploc = predicted_locations.astype(jnp.float32)
    gloc = gt_locations.astype(jnp.float32)
    lab = labels.astype(jnp.int32)

    # Free reshapes only (no HBM transpose passes): labels are fed twice,
    # prior-major for the smooth-L1 mask and lane-dense for the mining mask.
    lab_sub = lab[:, :, None]      # (B, P, 1)
    lab_lane = lab[:, None, :]     # (B, 1, P)

    pb, pp = B_pad - B, P_pad - P
    if pb or pp:
        conf = jnp.pad(conf, ((0, pb), (0, pp), (0, 0)))
        ploc = jnp.pad(ploc, ((0, pb), (0, pp), (0, 0)))
        gloc = jnp.pad(gloc, ((0, pb), (0, pp), (0, 0)))
        lab_sub = jnp.pad(lab_sub, ((0, pb), (0, pp), (0, 0)))
        lab_lane = jnp.pad(lab_lane, ((0, pb), (0, 0), (0, pp)))

    kernel = functools.partial(_multibox_loss_kernel,
                               neg_pos_ratio=int(neg_pos_ratio),
                               p_valid=int(P))
    partials = pl.pallas_call(
        kernel,
        out_shape=jax.ShapeDtypeStruct((nblk, 1, 128), jnp.float32),
        grid_spec=pltpu.PrefetchScalarGridSpec(
            num_scalar_prefetch=0,
            grid=(nblk,),
            in_specs=[
                pl.BlockSpec((Bt, P_pad, C), lambda b: (b, 0, 0)),
                pl.BlockSpec((Bt, P_pad, 4), lambda b: (b, 0, 0)),
                pl.BlockSpec((Bt, P_pad, 4), lambda b: (b, 0, 0)),
                pl.BlockSpec((Bt, P_pad, 1), lambda b: (b, 0, 0)),
                pl.BlockSpec((Bt, 1, P_pad), lambda b: (b, 0, 0)),
            ],
            out_specs=pl.BlockSpec((None, 1, 128), lambda b: (b, 0, 0)),
        ),
        # Each block writes its own partials row -> safe to shard across
        # TensorCores on v7x; harmless on single-TC v5e/v6e.
        compiler_params=pltpu.CompilerParams(
            dimension_semantics=("parallel",)),
    )(conf, ploc, gloc, lab_sub, lab_lane)

    sl1_sum = jnp.sum(partials[:, 0, 0])
    cls_sum = jnp.sum(partials[:, 0, 1])
    num_pos = jnp.sum(partials[:, 0, 2])
    # num_pos == 0 over the whole batch gives Inf/NaN, matching the PyTorch
    # reference behaviour.
    return sl1_sum / num_pos, cls_sum / num_pos


def _reference(confidence, predicted_locations, labels, gt_locations,
               neg_pos_ratio=3):
    """Pure-JAX reference mirroring the PyTorch forward, for validation."""
    logp = jax.nn.log_softmax(confidence, axis=2)
    loss = -logp[:, :, 0]
    pos = labels > 0
    num_pos_row = pos.sum(axis=1, keepdims=True)
    loss = jnp.where(pos, -jnp.inf, loss)
    idx = jnp.argsort(-loss, axis=1)
    orders = jnp.argsort(idx, axis=1)
    neg = orders < num_pos_row * neg_pos_ratio
    mask = pos | neg
    ce = -jnp.take_along_axis(logp, labels[..., None], axis=2)[..., 0]
    cls_sum = jnp.sum(jnp.where(mask, ce, 0.0))
    d = jnp.abs(predicted_locations - gt_locations)
    sl1 = jnp.where(d < 1.0, 0.5 * d * d, d - 0.5)
    sl1_sum = jnp.sum(jnp.where(pos[..., None], sl1, 0.0))
    n = pos.sum().astype(jnp.float32)
    return sl1_sum / n, cls_sum / n


if __name__ == "__main__":
    B, P, C = 2, 64, 8
    NEG_POS_RATIO = 3
    key = jax.random.PRNGKey(0)
    k1, k2, k3, k4, k5 = jax.random.split(key, 5)

    # Deterministic "module parameters" (unused in forward, kept for parity
    # with the torch module's __init__).
    priors = jax.random.uniform(k5, (P, 4), dtype=jnp.float32)  # unused
    iou_threshold = 0.5          # unused in forward
    center_variance = 0.1        # unused in forward
    size_variance = 0.2          # unused in forward

    confidence = jax.random.normal(k1, (B, P, C), dtype=jnp.float32)
    predicted_locations = jax.random.normal(k2, (B, P, 4), dtype=jnp.float32)
    gt_locations = jax.random.normal(k3, (B, P, 4), dtype=jnp.float32)
    # labels: mostly background (0), a few positives
    labels = jnp.where(jax.random.uniform(k4, (B, P)) > 0.85,
                       jax.random.randint(k4, (B, P), 1, C), 0).astype(jnp.int32)

    reg_loss, cls_loss = multibox_loss(
        confidence, predicted_locations, labels, gt_locations,
        neg_pos_ratio=NEG_POS_RATIO)
    jax.block_until_ready((reg_loss, cls_loss))

    reg_ref, cls_ref = _reference(
        confidence, predicted_locations, labels, gt_locations,
        neg_pos_ratio=NEG_POS_RATIO)
    np.testing.assert_allclose(np.asarray(reg_loss), np.asarray(reg_ref),
                               rtol=1e-5, atol=1e-5)
    np.testing.assert_allclose(np.asarray(cls_loss), np.asarray(cls_ref),
                               rtol=1e-5, atol=1e-5)

    print("KERNEL_OK")
</pallas_src>

<mosaic_0001>
module attributes {stable_mosaic.version = 11 : i64} {
  func.func @_multibox_loss_kernel(%arg0: i32, %arg1: memref<2x128x8xf32, #tpu.memory_space<vmem>>, %arg2: memref<2x128x4xf32, #tpu.memory_space<vmem>>, %arg3: memref<2x128x4xf32, #tpu.memory_space<vmem>>, %arg4: memref<2x128x1xi32, #tpu.memory_space<vmem>>, %arg5: memref<2x1x128xi32, #tpu.memory_space<vmem>>, %arg6: memref<1x1x128xf32, #tpu.memory_space<vmem>>) attributes {dimension_semantics = [#tpu.dimension_semantics<parallel>], iteration_bounds = array<i64: 1>, scalar_prefetch = 0 : i64, scratch_operands = 0 : i64, tpu.core_type = #tpu.core_type<tc>, window_params = [{transform_indices = @transform_0, window_bounds = array<i64: 2, 128, 8>}, {transform_indices = @transform_1, window_bounds = array<i64: 2, 128, 4>}, {transform_indices = @transform_2, window_bounds = array<i64: 2, 128, 4>}, {transform_indices = @transform_3, window_bounds = array<i64: 2, 128, 1>}, {transform_indices = @transform_4, window_bounds = array<i64: 2, 1, 128>}, {transform_indices = @transform_5, window_bounds = array<i64: 1, 1, 128>}]} {
    %c0 = arith.constant 0 : index
    %c0_0 = arith.constant 0 : index
    %c0_1 = arith.constant 0 : index
    %0 = vector.load %arg1[%c0, %c0_0, %c0_1] : memref<2x128x8xf32, #tpu.memory_space<vmem>>, vector<2x128x8xf32>
    %1 = tpu.transpose %0, [0, 2, 1] : vector<2x128x8xf32> -> vector<2x8x128xf32>
    %c0_2 = arith.constant 0 : index
    %c0_3 = arith.constant 0 : index
    %c0_4 = arith.constant 0 : index
    %2 = vector.load %arg5[%c0_2, %c0_3, %c0_4] : memref<2x1x128xi32, #tpu.memory_space<vmem>>, vector<2x1x128xi32>
    %cst = arith.constant dense<0xFF800000> : vector<2x128xf32>
    %3 = vector.multi_reduction <maximumf>, %1, %cst [1] : vector<2x8x128xf32> to vector<2x128xf32>
    %4 = vector.shape_cast %3 : vector<2x128xf32> to vector<2x1x128xf32>
    %5 = vector.broadcast %4 : vector<2x1x128xf32> to vector<2x8x128xf32>
    %6 = arith.subf %1, %5 : vector<2x8x128xf32>
    %7 = math.exp %6 : vector<2x8x128xf32>
    %cst_5 = arith.constant dense<0.000000e+00> : vector<2x128xf32>
    %8 = vector.multi_reduction <add>, %7, %cst_5 [1] : vector<2x8x128xf32> to vector<2x128xf32>
    %9 = vector.shape_cast %8 : vector<2x128xf32> to vector<2x1x128xf32>
    %10 = math.log %9 : vector<2x1x128xf32>
    %11 = arith.addf %4, %10 : vector<2x1x128xf32>
    %12 = tpu.iota {dimensions = array<i32: 1>} : vector<2x8x128xi32>
    %13 = vector.broadcast %2 : vector<2x1x128xi32> to vector<2x8x128xi32>
    %14 = arith.cmpi eq, %12, %13 : vector<2x8x128xi32>
    %cst_6 = arith.constant 0.000000e+00 : f32
    %15 = vector.broadcast %cst_6 : f32 to vector<2x8x128xf32>
    %16 = arith.select %14, %1, %15 : vector<2x8x128xi1>, vector<2x8x128xf32>
    %cst_7 = arith.constant dense<0.000000e+00> : vector<2x128xf32>
    %17 = vector.multi_reduction <add>, %16, %cst_7 [1] : vector<2x8x128xf32> to vector<2x128xf32>
    %18 = vector.shape_cast %17 : vector<2x128xf32> to vector<2x1x128xf32>
    %19 = arith.subf %11, %18 : vector<2x1x128xf32>
    %20 = vector.extract_strided_slice %1 {offsets = [0, 0, 0], sizes = [2, 1, 128], strides = [1, 1, 1]} : vector<2x8x128xf32> to vector<2x1x128xf32>
    %21 = arith.subf %11, %20 : vector<2x1x128xf32>
    %22 = tpu.iota {dimensions = array<i32: 2>} : vector<2x1x128xi32>
    %c64_i32 = arith.constant 64 : i32
    %23 = vector.broadcast %c64_i32 : i32 to vector<2x1x128xi32>
    %24 = arith.cmpi slt, %22, %23 : vector<2x1x128xi32>
    %c0_i32 = arith.constant 0 : i32
    %25 = vector.broadcast %c0_i32 : i32 to vector<2x1x128xi32>
    %26 = arith.cmpi sgt, %2, %25 : vector<2x1x128xi32>
    %27 = arith.andi %26, %24 : vector<2x1x128xi1>
    %28 = arith.extui %27 : vector<2x1x128xi1> to vector<2x1x128xi32>
    %cst_8 = arith.constant dense<0> : vector<2x1xi32>
    %29 = vector.multi_reduction <add>, %28, %cst_8 [2] : vector<2x1x128xi32> to vector<2x1xi32>
    %30 = vector.shape_cast %29 : vector<2x1xi32> to vector<2x1x1xi32>
    %c3_i32 = arith.constant 3 : i32
    %31 = vector.broadcast %c3_i32 : i32 to vector<2x1x1xi32>
    %32 = arith.muli %30, %31 : vector<2x1x1xi32>
    %c1_i32 = arith.constant 1 : i32
    %c64_i32_9 = arith.constant 64 : i32
    %33 = vector.broadcast %c1_i32 : i32 to vector<2x1x1xi32>
    %34 = arith.maxsi %33, %32 : vector<2x1x1xi32>
    %35 = vector.broadcast %c64_i32_9 : i32 to vector<2x1x1xi32>
    %36 = arith.minsi %35, %34 : vector<2x1x1xi32>
    %37 = tpu.bitcast %21 : vector<2x1x128xf32> -> vector<2x1x128xi32>
    %cst_10 = arith.constant dense<true> : vector<2x1x128xi1>
    %38 = arith.xori %24, %cst_10 : vector<2x1x128xi1>
    %39 = arith.ori %27, %38 : vector<2x1x128xi1>
    %c-1_i32 = arith.constant -1 : i32
    %40 = vector.broadcast %c-1_i32 : i32 to vector<2x1x128xi32>
    %41 = arith.select %39, %40, %37 : vector<2x1x128xi1>, vector<2x1x128xi32>
    %c0_i32_11 = arith.constant 0 : i32
    %42 = vector.broadcast %c0_i32_11 : i32 to vector<2x1x1xi32>
    %c2139095041_i32 = arith.constant 2139095041 : i32
    %43 = vector.broadcast %c2139095041_i32 : i32 to vector<2x1x1xi32>
    %44 = arith.subi %43, %42 : vector<2x1x1xi32>
    %c1_i32_12 = arith.constant 1 : i32
    %45 = vector.broadcast %c1_i32_12 : i32 to vector<2x1x1xi32>
    %46 = arith.shrsi %44, %45 : vector<2x1x1xi32>
    %47 = arith.addi %42, %46 : vector<2x1x1xi32>
    %48 = vector.broadcast %47 : vector<2x1x1xi32> to vector<2x1x128xi32>
    %49 = arith.cmpi sge, %41, %48 : vector<2x1x128xi32>
    %50 = arith.extui %49 : vector<2x1x128xi1> to vector<2x1x128xi32>
    %cst_13 = arith.constant dense<0> : vector<2x1xi32>
    %51 = vector.multi_reduction <add>, %50, %cst_13 [2] : vector<2x1x128xi32> to vector<2x1xi32>
    %52 = vector.shape_cast %51 : vector<2x1xi32> to vector<2x1x1xi32>
    %53 = arith.cmpi sge, %52, %36 : vector<2x1x1xi32>
    %54 = arith.select %53, %47, %42 : vector<2x1x1xi1>, vector<2x1x1xi32>
    %55 = arith.select %53, %43, %47 : vector<2x1x1xi1>, vector<2x1x1xi32>
    %56 = arith.subi %55, %54 : vector<2x1x1xi32>
    %c1_i32_14 = arith.constant 1 : i32
    %57 = vector.broadcast %c1_i32_14 : i32 to vector<2x1x1xi32>
    %58 = arith.shrsi %56, %57 : vector<2x1x1xi32>
    %59 = arith.addi %54, %58 : vector<2x1x1xi32>
    %60 = vector.broadcast %59 : vector<2x1x1xi32> to vector<2x1x128xi32>
    %61 = arith.cmpi sge, %41, %60 : vector<2x1x128xi32>
    %62 = arith.extui %61 : vector<2x1x128xi1> to vector<2x1x128xi32>
    %cst_15 = arith.constant dense<0> : vector<2x1xi32>
    %63 = vector.multi_reduction <add>, %62, %cst_15 [2] : vector<2x1x128xi32> to vector<2x1xi32>
    %64 = vector.shape_cast %63 : vector<2x1xi32> to vector<2x1x1xi32>
    %65 = arith.cmpi sge, %64, %36 : vector<2x1x1xi32>
    %66 = arith.select %65, %59, %54 : vector<2x1x1xi1>, vector<2x1x1xi32>
    %67 = arith.select %65, %55, %59 : vector<2x1x1xi1>, vector<2x1x1xi32>
    %68 = arith.subi %67, %66 : vector<2x1x1xi32>
    %c1_i32_16 = arith.constant 1 : i32
    %69 = vector.broadcast %c1_i32_16 : i32 to vector<2x1x1xi32>
    %70 = arith.shrsi %68, %69 : vector<2x1x1xi32>
    %71 = arith.addi %66, %70 : vector<2x1x1xi32>
    %72 = vector.broadcast %71 : vector<2x1x1xi32> to vector<2x1x128xi32>
    %73 = arith.cmpi sge, %41, %72 : vector<2x1x128xi32>
    %74 = arith.extui %73 : vector<2x1x128xi1> to vector<2x1x128xi32>
    %cst_17 = arith.constant dense<0> : vector<2x1xi32>
    %75 = vector.multi_reduction <add>, %74, %cst_17 [2] : vector<2x1x128xi32> to vector<2x1xi32>
    %76 = vector.shape_cast %75 : vector<2x1xi32> to vector<2x1x1xi32>
    %77 = arith.cmpi sge, %76, %36 : vector<2x1x1xi32>
    %78 = arith.select %77, %71, %66 : vector<2x1x1xi1>, vector<2x1x1xi32>
    %79 = arith.select %77, %67, %71 : vector<2x1x1xi1>, vector<2x1x1xi32>
    %80 = arith.subi %79, %78 : vector<2x1x1xi32>
    %c1_i32_18 = arith.constant 1 : i32
    %81 = vector.broadcast %c1_i32_18 : i32 to vector<2x1x1xi32>
    %82 = arith.shrsi %80, %81 : vector<2x1x1xi32>
    %83 = arith.addi %78, %82 : vector<2x1x1xi32>
    %84 = vector.broadcast %83 : vector<2x1x1xi32> to vector<2x1x128xi32>
    %85 = arith.cmpi sge, %41, %84 : vector<2x1x128xi32>
    %86 = arith.extui %85 : vector<2x1x128xi1> to vector<2x1x128xi32>
    %cst_19 = arith.constant dense<0> : vector<2x1xi32>
    %87 = vector.multi_reduction <add>, %86, %cst_19 [2] : vector<2x1x128xi32> to vector<2x1xi32>
    %88 = vector.shape_cast %87 : vector<2x1xi32> to vector<2x1x1xi32>
    %89 = arith.cmpi sge, %88, %36 : vector<2x1x1xi32>
    %90 = arith.select %89, %83, %78 : vector<2x1x1xi1>, vector<2x1x1xi32>
    %91 = arith.select %89, %79, %83 : vector<2x1x1xi1>, vector<2x1x1xi32>
    %92 = arith.subi %91, %90 : vector<2x1x1xi32>
    %c1_i32_20 = arith.constant 1 : i32
    %93 = vector.broadcast %c1_i32_20 : i32 to vector<2x1x1xi32>
    %94 = arith.shrsi %92, %93 : vector<2x1x1xi32>
    %95 = arith.addi %90, %94 : vector<2x1x1xi32>
    %96 = vector.broadcast %95 : vector<2x1x1xi32> to vector<2x1x128xi32>
    %97 = arith.cmpi sge, %41, %96 : vector<2x1x128xi32>
    %98 = arith.extui %97 : vector<2x1x128xi1> to vector<2x1x128xi32>
    %cst_21 = arith.constant dense<0> : vector<2x1xi32>
    %99 = vector.multi_reduction <add>, %98, %cst_21 [2] : vector<2x1x128xi32> to vector<2x1xi32>
    %100 = vector.shape_cast %99 : vector<2x1xi32> to vector<2x1x1xi32>
    %101 = arith.cmpi sge, %100, %36 : vector<2x1x1xi32>
    %102 = arith.select %101, %95, %90 : vector<2x1x1xi1>, vector<2x1x1xi32>
    %103 = arith.select %101, %91, %95 : vector<2x1x1xi1>, vector<2x1x1xi32>
    %104 = arith.subi %103, %102 : vector<2x1x1xi32>
    %c1_i32_22 = arith.constant 1 : i32
    %105 = vector.broadcast %c1_i32_22 : i32 to vector<2x1x1xi32>
    %106 = arith.shrsi %104, %105 : vector<2x1x1xi32>
    %107 = arith.addi %102, %106 : vector<2x1x1xi32>
    %108 = vector.broadcast %107 : vector<2x1x1xi32> to vector<2x1x128xi32>
    %109 = arith.cmpi sge, %41, %108 : vector<2x1x128xi32>
    %110 = arith.extui %109 : vector<2x1x128xi1> to vector<2x1x128xi32>
    %cst_23 = arith.constant dense<0> : vector<2x1xi32>
    %111 = vector.multi_reduction <add>, %110, %cst_23 [2] : vector<2x1x128xi32> to vector<2x1xi32>
    %112 = vector.shape_cast %111 : vector<2x1xi32> to vector<2x1x1xi32>
    %113 = arith.cmpi sge, %112, %36 : vector<2x1x1xi32>
    %114 = arith.select %113, %107, %102 : vector<2x1x1xi1>, vector<2x1x1xi32>
    %115 = arith.select %113, %103, %107 : vector<2x1x1xi1>, vector<2x1x1xi32>
    %116 = arith.subi %115, %114 : vector<2x1x1xi32>
    %c1_i32_24 = arith.constant 1 : i32
    %117 = vector.broadcast %c1_i32_24 : i32 to vector<2x1x1xi32>
    %118 = arith.shrsi %116, %117 : vector<2x1x1xi32>
    %119 = arith.addi %114, %118 : vector<2x1x1xi32>
    %120 = vector.broadcast %119 : vector<2x1x1xi32> to vector<2x1x128xi32>
    %121 = arith.cmpi sge, %41, %120 : vector<2x1x128xi32>
    %122 = arith.extui %121 : vector<2x1x128xi1> to vector<2x1x128xi32>
    %cst_25 = arith.constant dense<0> : vector<2x1xi32>
    %123 = vector.multi_reduction <add>, %122, %cst_25 [2] : vector<2x1x128xi32> to vector<2x1xi32>
    %124 = vector.shape_cast %123 : vector<2x1xi32> to vector<2x1x1xi32>
    %125 = arith.cmpi sge, %124, %36 : vector<2x1x1xi32>
    %126 = arith.select %125, %119, %114 : vector<2x1x1xi1>, vector<2x1x1xi32>
    %127 = arith.select %125, %115, %119 : vector<2x1x1xi1>, vector<2x1x1xi32>
    %128 = arith.subi %127, %126 : vector<2x1x1xi32>
    %c1_i32_26 = arith.constant 1 : i32
    %129 = vector.broadcast %c1_i32_26 : i32 to vector<2x1x1xi32>
    %130 = arith.shrsi %128, %129 : vector<2x1x1xi32>
    %131 = arith.addi %126, %130 : vector<2x1x1xi32>
    %132 = vector.broadcast %131 : vector<2x1x1xi32> to vector<2x1x128xi32>
    %133 = arith.cmpi sge, %41, %132 : vector<2x1x128xi32>
    %134 = arith.extui %133 : vector<2x1x128xi1> to vector<2x1x128xi32>
    %cst_27 = arith.constant dense<0> : vector<2x1xi32>
    %135 = vector.multi_reduction <add>, %134, %cst_27 [2] : vector<2x1x128xi32> to vector<2x1xi32>
    %136 = vector.shape_cast %135 : vector<2x1xi32> to vector<2x1x1xi32>
    %137 = arith.cmpi sge, %136, %36 : vector<2x1x1xi32>
    %138 = arith.select %137, %131, %126 : vector<2x1x1xi1>, vector<2x1x1xi32>
    %139 = arith.select %137, %127, %131 : vector<2x1x1xi1>, vector<2x1x1xi32>
    %140 = arith.subi %139, %138 : vector<2x1x1xi32>
    %c1_i32_28 = arith.constant 1 : i32
    %141 = vector.broadcast %c1_i32_28 : i32 to vector<2x1x1xi32>
    %142 = arith.shrsi %140, %141 : vector<2x1x1xi32>
    %143 = arith.addi %138, %142 : vector<2x1x1xi32>
    %144 = vector.broadcast %143 : vector<2x1x1xi32> to vector<2x1x128xi32>
    %145 = arith.cmpi sge, %41, %144 : vector<2x1x128xi32>
    %146 = arith.extui %145 : vector<2x1x128xi1> to vector<2x1x128xi32>
    %cst_29 = arith.constant dense<0> : vector<2x1xi32>
    %147 = vector.multi_reduction <add>, %146, %cst_29 [2] : vector<2x1x128xi32> to vector<2x1xi32>
    %148 = vector.shape_cast %147 : vector<2x1xi32> to vector<2x1x1xi32>
    %149 = arith.cmpi sge, %148, %36 : vector<2x1x1xi32>
    %150 = arith.select %149, %143, %138 : vector<2x1x1xi1>, vector<2x1x1xi32>
    %151 = arith.select %149, %139, %143 : vector<2x1x1xi1>, vector<2x1x1xi32>
    %152 = arith.subi %151, %150 : vector<2x1x1xi32>
    %c1_i32_30 = arith.constant 1 : i32
    %153 = vector.broadcast %c1_i32_30 : i32 to vector<2x1x1xi32>
    %154 = arith.shrsi %152, %153 : vector<2x1x1xi32>
    %155 = arith.addi %150, %154 : vector<2x1x1xi32>
    %156 = vector.broadcast %155 : vector<2x1x1xi32> to vector<2x1x128xi32>
    %157 = arith.cmpi sge, %41, %156 : vector<2x1x128xi32>
    %158 = arith.extui %157 : vector<2x1x128xi1> to vector<2x1x128xi32>
    %cst_31 = arith.constant dense<0> : vector<2x1xi32>
    %159 = vector.multi_reduction <add>, %158, %cst_31 [2] : vector<2x1x128xi32> to vector<2x1xi32>
    %160 = vector.shape_cast %159 : vector<2x1xi32> to vector<2x1x1xi32>
    %161 = arith.cmpi sge, %160, %36 : vector<2x1x1xi32>
    %162 = arith.select %161, %155, %150 : vector<2x1x1xi1>, vector<2x1x1xi32>
    %163 = arith.select %161, %151, %155 : vector<2x1x1xi1>, vector<2x1x1xi32>
    %164 = arith.subi %163, %162 : vector<2x1x1xi32>
    %c1_i32_32 = arith.constant 1 : i32
    %165 = vector.broadcast %c1_i32_32 : i32 to vector<2x1x1xi32>
    %166 = arith.shrsi %164, %165 : vector<2x1x1xi32>
    %167 = arith.addi %162, %166 : vector<2x1x1xi32>
    %168 = vector.broadcast %167 : vector<2x1x1xi32> to vector<2x1x128xi32>
    %169 = arith.cmpi sge, %41, %168 : vector<2x1x128xi32>
    %170 = arith.extui %169 : vector<2x1x128xi1> to vector<2x1x128xi32>
    %cst_33 = arith.constant dense<0> : vector<2x1xi32>
    %171 = vector.multi_reduction <add>, %170, %cst_33 [2] : vector<2x1x128xi32> to vector<2x1xi32>
    %172 = vector.shape_cast %171 : vector<2x1xi32> to vector<2x1x1xi32>
    %173 = arith.cmpi sge, %172, %36 : vector<2x1x1xi32>
    %174 = arith.select %173, %167, %162 : vector<2x1x1xi1>, vector<2x1x1xi32>
    %175 = arith.select %173, %163, %167 : vector<2x1x1xi1>, vector<2x1x1xi32>
    %176 = arith.subi %175, %174 : vector<2x1x1xi32>
    %c1_i32_34 = arith.constant 1 : i32
    %177 = vector.broadcast %c1_i32_34 : i32 to vector<2x1x1xi32>
    %178 = arith.shrsi %176, %177 : vector<2x1x1xi32>
    %179 = arith.addi %174, %178 : vector<2x1x1xi32>
    %180 = vector.broadcast %179 : vector<2x1x1xi32> to vector<2x1x128xi32>
    %181 = arith.cmpi sge, %41, %180 : vector<2x1x128xi32>
    %182 = arith.extui %181 : vector<2x1x128xi1> to vector<2x1x128xi32>
    %cst_35 = arith.constant dense<0> : vector<2x1xi32>
    %183 = vector.multi_reduction <add>, %182, %cst_35 [2] : vector<2x1x128xi32> to vector<2x1xi32>
    %184 = vector.shape_cast %183 : vector<2x1xi32> to vector<2x1x1xi32>
    %185 = arith.cmpi sge, %184, %36 : vector<2x1x1xi32>
    %186 = arith.select %185, %179, %174 : vector<2x1x1xi1>, vector<2x1x1xi32>
    %187 = arith.select %185, %175, %179 : vector<2x1x1xi1>, vector<2x1x1xi32>
    %188 = arith.subi %187, %186 : vector<2x1x1xi32>
    %c1_i32_36 = arith.constant 1 : i32
    %189 = vector.broadcast %c1_i32_36 : i32 to vector<2x1x1xi32>
    %190 = arith.shrsi %188, %189 : vector<2x1x1xi32>
    %191 = arith.addi %186, %190 : vector<2x1x1xi32>
    %192 = vector.broadcast %191 : vector<2x1x1xi32> to vector<2x1x128xi32>
    %193 = arith.cmpi sge, %41, %192 : vector<2x1x128xi32>
    %194 = arith.extui %193 : vector<2x1x128xi1> to vector<2x1x128xi32>
    %cst_37 = arith.constant dense<0> : vector<2x1xi32>
    %195 = vector.multi_reduction <add>, %194, %cst_37 [2] : vector<2x1x128xi32> to vector<2x1xi32>
    %196 = vector.shape_cast %195 : vector<2x1xi32> to vector<2x1x1xi32>
    %197 = arith.cmpi sge, %196, %36 : vector<2x1x1xi32>
    %198 = arith.select %197, %191, %186 : vector<2x1x1xi1>, vector<2x1x1xi32>
    %199 = arith.select %197, %187, %191 : vector<2x1x1xi1>, vector<2x1x1xi32>
    %200 = arith.subi %199, %198 : vector<2x1x1xi32>
    %c1_i32_38 = arith.constant 1 : i32
    %201 = vector.broadcast %c1_i32_38 : i32 to vector<2x1x1xi32>
    %202 = arith.shrsi %200, %201 : vector<2x1x1xi32>
    %203 = arith.addi %198, %202 : vector<2x1x1xi32>
    %204 = vector.broadcast %203 : vector<2x1x1xi32> to vector<2x1x128xi32>
    %205 = arith.cmpi sge, %41, %204 : vector<2x1x128xi32>
    %206 = arith.extui %205 : vector<2x1x128xi1> to vector<2x1x128xi32>
    %cst_39 = arith.constant dense<0> : vector<2x1xi32>
    %207 = vector.multi_reduction <add>, %206, %cst_39 [2] : vector<2x1x128xi32> to vector<2x1xi32>
    %208 = vector.shape_cast %207 : vector<2x1xi32> to vector<2x1x1xi32>
    %209 = arith.cmpi sge, %208, %36 : vector<2x1x1xi32>
    %210 = arith.select %209, %203, %198 : vector<2x1x1xi1>, vector<2x1x1xi32>
    %211 = arith.select %209, %199, %203 : vector<2x1x1xi1>, vector<2x1x1xi32>
    %212 = arith.subi %211, %210 : vector<2x1x1xi32>
    %c1_i32_40 = arith.constant 1 : i32
    %213 = vector.broadcast %c1_i32_40 : i32 to vector<2x1x1xi32>
    %214 = arith.shrsi %212, %213 : vector<2x1x1xi32>
    %215 = arith.addi %210, %214 : vector<2x1x1xi32>
    %216 = vector.broadcast %215 : vector<2x1x1xi32> to vector<2x1x128xi32>
    %217 = arith.cmpi sge, %41, %216 : vector<2x1x128xi32>
    %218 = arith.extui %217 : vector<2x1x128xi1> to vector<2x1x128xi32>
    %cst_41 = arith.constant dense<0> : vector<2x1xi32>
    %219 = vector.multi_reduction <add>, %218, %cst_41 [2] : vector<2x1x128xi32> to vector<2x1xi32>
    %220 = vector.shape_cast %219 : vector<2x1xi32> to vector<2x1x1xi32>
    %221 = arith.cmpi sge, %220, %36 : vector<2x1x1xi32>
    %222 = arith.select %221, %215, %210 : vector<2x1x1xi1>, vector<2x1x1xi32>
    %223 = arith.select %221, %211, %215 : vector<2x1x1xi1>, vector<2x1x1xi32>
    %224 = arith.subi %223, %222 : vector<2x1x1xi32>
    %c1_i32_42 = arith.constant 1 : i32
    %225 = vector.broadcast %c1_i32_42 : i32 to vector<2x1x1xi32>
    %226 = arith.shrsi %224, %225 : vector<2x1x1xi32>
    %227 = arith.addi %222, %226 : vector<2x1x1xi32>
    %228 = vector.broadcast %227 : vector<2x1x1xi32> to vector<2x1x128xi32>
    %229 = arith.cmpi sge, %41, %228 : vector<2x1x128xi32>
    %230 = arith.extui %229 : vector<2x1x128xi1> to vector<2x1x128xi32>
    %cst_43 = arith.constant dense<0> : vector<2x1xi32>
    %231 = vector.multi_reduction <add>, %230, %cst_43 [2] : vector<2x1x128xi32> to vector<2x1xi32>
    %232 = vector.shape_cast %231 : vector<2x1xi32> to vector<2x1x1xi32>
    %233 = arith.cmpi sge, %232, %36 : vector<2x1x1xi32>
    %234 = arith.select %233, %227, %222 : vector<2x1x1xi1>, vector<2x1x1xi32>
    %235 = arith.select %233, %223, %227 : vector<2x1x1xi1>, vector<2x1x1xi32>
    %236 = arith.subi %235, %234 : vector<2x1x1xi32>
    %c1_i32_44 = arith.constant 1 : i32
    %237 = vector.broadcast %c1_i32_44 : i32 to vector<2x1x1xi32>
    %238 = arith.shrsi %236, %237 : vector<2x1x1xi32>
    %239 = arith.addi %234, %238 : vector<2x1x1xi32>
    %240 = vector.broadcast %239 : vector<2x1x1xi32> to vector<2x1x128xi32>
    %241 = arith.cmpi sge, %41, %240 : vector<2x1x128xi32>
    %242 = arith.extui %241 : vector<2x1x128xi1> to vector<2x1x128xi32>
    %cst_45 = arith.constant dense<0> : vector<2x1xi32>
    %243 = vector.multi_reduction <add>, %242, %cst_45 [2] : vector<2x1x128xi32> to vector<2x1xi32>
    %244 = vector.shape_cast %243 : vector<2x1xi32> to vector<2x1x1xi32>
    %245 = arith.cmpi sge, %244, %36 : vector<2x1x1xi32>
    %246 = arith.select %245, %239, %234 : vector<2x1x1xi1>, vector<2x1x1xi32>
    %247 = arith.select %245, %235, %239 : vector<2x1x1xi1>, vector<2x1x1xi32>
    %248 = arith.subi %247, %246 : vector<2x1x1xi32>
    %c1_i32_46 = arith.constant 1 : i32
    %249 = vector.broadcast %c1_i32_46 : i32 to vector<2x1x1xi32>
    %250 = arith.shrsi %248, %249 : vector<2x1x1xi32>
    %251 = arith.addi %246, %250 : vector<2x1x1xi32>
    %252 = vector.broadcast %251 : vector<2x1x1xi32> to vector<2x1x128xi32>
    %253 = arith.cmpi sge, %41, %252 : vector<2x1x128xi32>
    %254 = arith.extui %253 : vector<2x1x128xi1> to vector<2x1x128xi32>
    %cst_47 = arith.constant dense<0> : vector<2x1xi32>
    %255 = vector.multi_reduction <add>, %254, %cst_47 [2] : vector<2x1x128xi32> to vector<2x1xi32>
    %256 = vector.shape_cast %255 : vector<2x1xi32> to vector<2x1x1xi32>
    %257 = arith.cmpi sge, %256, %36 : vector<2x1x1xi32>
    %258 = arith.select %257, %251, %246 : vector<2x1x1xi1>, vector<2x1x1xi32>
    %259 = arith.select %257, %247, %251 : vector<2x1x1xi1>, vector<2x1x1xi32>
    %260 = arith.subi %259, %258 : vector<2x1x1xi32>
    %c1_i32_48 = arith.constant 1 : i32
    %261 = vector.broadcast %c1_i32_48 : i32 to vector<2x1x1xi32>
    %262 = arith.shrsi %260, %261 : vector<2x1x1xi32>
    %263 = arith.addi %258, %262 : vector<2x1x1xi32>
    %264 = vector.broadcast %263 : vector<2x1x1xi32> to vector<2x1x128xi32>
    %265 = arith.cmpi sge, %41, %264 : vector<2x1x128xi32>
    %266 = arith.extui %265 : vector<2x1x128xi1> to vector<2x1x128xi32>
    %cst_49 = arith.constant dense<0> : vector<2x1xi32>
    %267 = vector.multi_reduction <add>, %266, %cst_49 [2] : vector<2x1x128xi32> to vector<2x1xi32>
    %268 = vector.shape_cast %267 : vector<2x1xi32> to vector<2x1x1xi32>
    %269 = arith.cmpi sge, %268, %36 : vector<2x1x1xi32>
    %270 = arith.select %269, %263, %258 : vector<2x1x1xi1>, vector<2x1x1xi32>
    %271 = arith.select %269, %259, %263 : vector<2x1x1xi1>, vector<2x1x1xi32>
    %272 = arith.subi %271, %270 : vector<2x1x1xi32>
    %c1_i32_50 = arith.constant 1 : i32
    %273 = vector.broadcast %c1_i32_50 : i32 to vector<2x1x1xi32>
    %274 = arith.shrsi %272, %273 : vector<2x1x1xi32>
    %275 = arith.addi %270, %274 : vector<2x1x1xi32>
    %276 = vector.broadcast %275 : vector<2x1x1xi32> to vector<2x1x128xi32>
    %277 = arith.cmpi sge, %41, %276 : vector<2x1x128xi32>
    %278 = arith.extui %277 : vector<2x1x128xi1> to vector<2x1x128xi32>
    %cst_51 = arith.constant dense<0> : vector<2x1xi32>
    %279 = vector.multi_reduction <add>, %278, %cst_51 [2] : vector<2x1x128xi32> to vector<2x1xi32>
    %280 = vector.shape_cast %279 : vector<2x1xi32> to vector<2x1x1xi32>
    %281 = arith.cmpi sge, %280, %36 : vector<2x1x1xi32>
    %282 = arith.select %281, %275, %270 : vector<2x1x1xi1>, vector<2x1x1xi32>
    %283 = arith.select %281, %271, %275 : vector<2x1x1xi1>, vector<2x1x1xi32>
    %284 = arith.subi %283, %282 : vector<2x1x1xi32>
    %c1_i32_52 = arith.constant 1 : i32
    %285 = vector.broadcast %c1_i32_52 : i32 to vector<2x1x1xi32>
    %286 = arith.shrsi %284, %285 : vector<2x1x1xi32>
    %287 = arith.addi %282, %286 : vector<2x1x1xi32>
    %288 = vector.broadcast %287 : vector<2x1x1xi32> to vector<2x1x128xi32>
    %289 = arith.cmpi sge, %41, %288 : vector<2x1x128xi32>
    %290 = arith.extui %289 : vector<2x1x128xi1> to vector<2x1x128xi32>
    %cst_53 = arith.constant dense<0> : vector<2x1xi32>
    %291 = vector.multi_reduction <add>, %290, %cst_53 [2] : vector<2x1x128xi32> to vector<2x1xi32>
    %292 = vector.shape_cast %291 : vector<2x1xi32> to vector<2x1x1xi32>
    %293 = arith.cmpi sge, %292, %36 : vector<2x1x1xi32>
    %294 = arith.select %293, %287, %282 : vector<2x1x1xi1>, vector<2x1x1xi32>
    %295 = arith.select %293, %283, %287 : vector<2x1x1xi1>, vector<2x1x1xi32>
    %296 = arith.subi %295, %294 : vector<2x1x1xi32>
    %c1_i32_54 = arith.constant 1 : i32
    %297 = vector.broadcast %c1_i32_54 : i32 to vector<2x1x1xi32>
    %298 = arith.shrsi %296, %297 : vector<2x1x1xi32>
    %299 = arith.addi %294, %298 : vector<2x1x1xi32>
    %300 = vector.broadcast %299 : vector<2x1x1xi32> to vector<2x1x128xi32>
    %301 = arith.cmpi sge, %41, %300 : vector<2x1x128xi32>
    %302 = arith.extui %301 : vector<2x1x128xi1> to vector<2x1x128xi32>
    %cst_55 = arith.constant dense<0> : vector<2x1xi32>
    %303 = vector.multi_reduction <add>, %302, %cst_55 [2] : vector<2x1x128xi32> to vector<2x1xi32>
    %304 = vector.shape_cast %303 : vector<2x1xi32> to vector<2x1x1xi32>
    %305 = arith.cmpi sge, %304, %36 : vector<2x1x1xi32>
    %306 = arith.select %305, %299, %294 : vector<2x1x1xi1>, vector<2x1x1xi32>
    %307 = arith.select %305, %295, %299 : vector<2x1x1xi1>, vector<2x1x1xi32>
    %308 = arith.subi %307, %306 : vector<2x1x1xi32>
    %c1_i32_56 = arith.constant 1 : i32
    %309 = vector.broadcast %c1_i32_56 : i32 to vector<2x1x1xi32>
    %310 = arith.shrsi %308, %309 : vector<2x1x1xi32>
    %311 = arith.addi %306, %310 : vector<2x1x1xi32>
    %312 = vector.broadcast %311 : vector<2x1x1xi32> to vector<2x1x128xi32>
    %313 = arith.cmpi sge, %41, %312 : vector<2x1x128xi32>
    %314 = arith.extui %313 : vector<2x1x128xi1> to vector<2x1x128xi32>
    %cst_57 = arith.constant dense<0> : vector<2x1xi32>
    %315 = vector.multi_reduction <add>, %314, %cst_57 [2] : vector<2x1x128xi32> to vector<2x1xi32>
    %316 = vector.shape_cast %315 : vector<2x1xi32> to vector<2x1x1xi32>
    %317 = arith.cmpi sge, %316, %36 : vector<2x1x1xi32>
    %318 = arith.select %317, %311, %306 : vector<2x1x1xi1>, vector<2x1x1xi32>
    %319 = arith.select %317, %307, %311 : vector<2x1x1xi1>, vector<2x1x1xi32>
    %320 = arith.subi %319, %318 : vector<2x1x1xi32>
    %c1_i32_58 = arith.constant 1 : i32
    %321 = vector.broadcast %c1_i32_58 : i32 to vector<2x1x1xi32>
    %322 = arith.shrsi %320, %321 : vector<2x1x1xi32>
    %323 = arith.addi %318, %322 : vector<2x1x1xi32>
    %324 = vector.broadcast %323 : vector<2x1x1xi32> to vector<2x1x128xi32>
    %325 = arith.cmpi sge, %41, %324 : vector<2x1x128xi32>
    %326 = arith.extui %325 : vector<2x1x128xi1> to vector<2x1x128xi32>
    %cst_59 = arith.constant dense<0> : vector<2x1xi32>
    %327 = vector.multi_reduction <add>, %326, %cst_59 [2] : vector<2x1x128xi32> to vector<2x1xi32>
    %328 = vector.shape_cast %327 : vector<2x1xi32> to vector<2x1x1xi32>
    %329 = arith.cmpi sge, %328, %36 : vector<2x1x1xi32>
    %330 = arith.select %329, %323, %318 : vector<2x1x1xi1>, vector<2x1x1xi32>
    %331 = arith.select %329, %319, %323 : vector<2x1x1xi1>, vector<2x1x1xi32>
    %332 = arith.subi %331, %330 : vector<2x1x1xi32>
    %c1_i32_60 = arith.constant 1 : i32
    %333 = vector.broadcast %c1_i32_60 : i32 to vector<2x1x1xi32>
    %334 = arith.shrsi %332, %333 : vector<2x1x1xi32>
    %335 = arith.addi %330, %334 : vector<2x1x1xi32>
    %336 = vector.broadcast %335 : vector<2x1x1xi32> to vector<2x1x128xi32>
    %337 = arith.cmpi sge, %41, %336 : vector<2x1x128xi32>
    %338 = arith.extui %337 : vector<2x1x128xi1> to vector<2x1x128xi32>
    %cst_61 = arith.constant dense<0> : vector<2x1xi32>
    %339 = vector.multi_reduction <add>, %338, %cst_61 [2] : vector<2x1x128xi32> to vector<2x1xi32>
    %340 = vector.shape_cast %339 : vector<2x1xi32> to vector<2x1x1xi32>
    %341 = arith.cmpi sge, %340, %36 : vector<2x1x1xi32>
    %342 = arith.select %341, %335, %330 : vector<2x1x1xi1>, vector<2x1x1xi32>
    %343 = arith.select %341, %331, %335 : vector<2x1x1xi1>, vector<2x1x1xi32>
    %344 = arith.subi %343, %342 : vector<2x1x1xi32>
    %c1_i32_62 = arith.constant 1 : i32
    %345 = vector.broadcast %c1_i32_62 : i32 to vector<2x1x1xi32>
    %346 = arith.shrsi %344, %345 : vector<2x1x1xi32>
    %347 = arith.addi %342, %346 : vector<2x1x1xi32>
    %348 = vector.broadcast %347 : vector<2x1x1xi32> to vector<2x1x128xi32>
    %349 = arith.cmpi sge, %41, %348 : vector<2x1x128xi32>
    %350 = arith.extui %349 : vector<2x1x128xi1> to vector<2x1x128xi32>
    %cst_63 = arith.constant dense<0> : vector<2x1xi32>
    %351 = vector.multi_reduction <add>, %350, %cst_63 [2] : vector<2x1x128xi32> to vector<2x1xi32>
    %352 = vector.shape_cast %351 : vector<2x1xi32> to vector<2x1x1xi32>
    %353 = arith.cmpi sge, %352, %36 : vector<2x1x1xi32>
    %354 = arith.select %353, %347, %342 : vector<2x1x1xi1>, vector<2x1x1xi32>
    %355 = arith.select %353, %343, %347 : vector<2x1x1xi1>, vector<2x1x1xi32>
    %356 = arith.subi %355, %354 : vector<2x1x1xi32>
    %c1_i32_64 = arith.constant 1 : i32
    %357 = vector.broadcast %c1_i32_64 : i32 to vector<2x1x1xi32>
    %358 = arith.shrsi %356, %357 : vector<2x1x1xi32>
    %359 = arith.addi %354, %358 : vector<2x1x1xi32>
    %360 = vector.broadcast %359 : vector<2x1x1xi32> to vector<2x1x128xi32>
    %361 = arith.cmpi sge, %41, %360 : vector<2x1x128xi32>
    %362 = arith.extui %361 : vector<2x1x128xi1> to vector<2x1x128xi32>
    %cst_65 = arith.constant dense<0> : vector<2x1xi32>
    %363 = vector.multi_reduction <add>, %362, %cst_65 [2] : vector<2x1x128xi32> to vector<2x1xi32>
    %364 = vector.shape_cast %363 : vector<2x1xi32> to vector<2x1x1xi32>
    %365 = arith.cmpi sge, %364, %36 : vector<2x1x1xi32>
    %366 = arith.select %365, %359, %354 : vector<2x1x1xi1>, vector<2x1x1xi32>
    %367 = arith.select %365, %355, %359 : vector<2x1x1xi1>, vector<2x1x1xi32>
    %368 = arith.subi %367, %366 : vector<2x1x1xi32>
    %c1_i32_66 = arith.constant 1 : i32
    %369 = vector.broadcast %c1_i32_66 : i32 to vector<2x1x1xi32>
    %370 = arith.shrsi %368, %369 : vector<2x1x1xi32>
    %371 = arith.addi %366, %370 : vector<2x1x1xi32>
    %372 = vector.broadcast %371 : vector<2x1x1xi32> to vector<2x1x128xi32>
    %373 = arith.cmpi sge, %41, %372 : vector<2x1x128xi32>
    %374 = arith.extui %373 : vector<2x1x128xi1> to vector<2x1x128xi32>
    %cst_67 = arith.constant dense<0> : vector<2x1xi32>
    %375 = vector.multi_reduction <add>, %374, %cst_67 [2] : vector<2x1x128xi32> to vector<2x1xi32>
    %376 = vector.shape_cast %375 : vector<2x1xi32> to vector<2x1x1xi32>
    %377 = arith.cmpi sge, %376, %36 : vector<2x1x1xi32>
    %378 = arith.select %377, %371, %366 : vector<2x1x1xi1>, vector<2x1x1xi32>
    %379 = arith.select %377, %367, %371 : vector<2x1x1xi1>, vector<2x1x1xi32>
    %380 = arith.subi %379, %378 : vector<2x1x1xi32>
    %c1_i32_68 = arith.constant 1 : i32
    %381 = vector.broadcast %c1_i32_68 : i32 to vector<2x1x1xi32>
    %382 = arith.shrsi %380, %381 : vector<2x1x1xi32>
    %383 = arith.addi %378, %382 : vector<2x1x1xi32>
    %384 = vector.broadcast %383 : vector<2x1x1xi32> to vector<2x1x128xi32>
    %385 = arith.cmpi sge, %41, %384 : vector<2x1x128xi32>
    %386 = arith.extui %385 : vector<2x1x128xi1> to vector<2x1x128xi32>
    %cst_69 = arith.constant dense<0> : vector<2x1xi32>
    %387 = vector.multi_reduction <add>, %386, %cst_69 [2] : vector<2x1x128xi32> to vector<2x1xi32>
    %388 = vector.shape_cast %387 : vector<2x1xi32> to vector<2x1x1xi32>
    %389 = arith.cmpi sge, %388, %36 : vector<2x1x1xi32>
    %390 = arith.select %389, %383, %378 : vector<2x1x1xi1>, vector<2x1x1xi32>
    %391 = arith.select %389, %379, %383 : vector<2x1x1xi1>, vector<2x1x1xi32>
    %392 = arith.subi %391, %390 : vector<2x1x1xi32>
    %c1_i32_70 = arith.constant 1 : i32
    %393 = vector.broadcast %c1_i32_70 : i32 to vector<2x1x1xi32>
    %394 = arith.shrsi %392, %393 : vector<2x1x1xi32>
    %395 = arith.addi %390, %394 : vector<2x1x1xi32>
    %396 = vector.broadcast %395 : vector<2x1x1xi32> to vector<2x1x128xi32>
    %397 = arith.cmpi sge, %41, %396 : vector<2x1x128xi32>
    %398 = arith.extui %397 : vector<2x1x128xi1> to vector<2x1x128xi32>
    %cst_71 = arith.constant dense<0> : vector<2x1xi32>
    %399 = vector.multi_reduction <add>, %398, %cst_71 [2] : vector<2x1x128xi32> to vector<2x1xi32>
    %400 = vector.shape_cast %399 : vector<2x1xi32> to vector<2x1x1xi32>
    %401 = arith.cmpi sge, %400, %36 : vector<2x1x1xi32>
    %402 = arith.select %401, %395, %390 : vector<2x1x1xi1>, vector<2x1x1xi32>
    %403 = arith.select %401, %391, %395 : vector<2x1x1xi1>, vector<2x1x1xi32>
    %404 = arith.subi %403, %402 : vector<2x1x1xi32>
    %c1_i32_72 = arith.constant 1 : i32
    %405 = vector.broadcast %c1_i32_72 : i32 to vector<2x1x1xi32>
    %406 = arith.shrsi %404, %405 : vector<2x1x1xi32>
    %407 = arith.addi %402, %406 : vector<2x1x1xi32>
    %408 = vector.broadcast %407 : vector<2x1x1xi32> to vector<2x1x128xi32>
    %409 = arith.cmpi sge, %41, %408 : vector<2x1x128xi32>
    %410 = arith.extui %409 : vector<2x1x128xi1> to vector<2x1x128xi32>
    %cst_73 = arith.constant dense<0> : vector<2x1xi32>
    %411 = vector.multi_reduction <add>, %410, %cst_73 [2] : vector<2x1x128xi32> to vector<2x1xi32>
    %412 = vector.shape_cast %411 : vector<2x1xi32> to vector<2x1x1xi32>
    %413 = arith.cmpi sge, %412, %36 : vector<2x1x1xi32>
    %414 = arith.select %413, %407, %402 : vector<2x1x1xi1>, vector<2x1x1xi32>
    %415 = vector.broadcast %414 : vector<2x1x1xi32> to vector<2x1x128xi32>
    %416 = arith.cmpi sge, %41, %415 : vector<2x1x128xi32>
    %c0_i32_74 = arith.constant 0 : i32
    %417 = vector.broadcast %c0_i32_74 : i32 to vector<2x1x1xi32>
    %418 = arith.cmpi sgt, %32, %417 : vector<2x1x1xi32>
    %419 = vector.broadcast %418 : vector<2x1x1xi1> to vector<2x1x128xi1>
    %420 = arith.andi %416, %419 : vector<2x1x128xi1>
    %421 = arith.ori %27, %420 : vector<2x1x128xi1>
    %cst_75 = arith.constant 0.000000e+00 : f32
    %422 = vector.broadcast %cst_75 : f32 to vector<2x1x128xf32>
    %423 = arith.select %421, %19, %422 : vector<2x1x128xi1>, vector<2x1x128xf32>
    %424 = vector.shape_cast %423 : vector<2x1x128xf32> to vector<1x2x1x128xf32>
    %cst_76 = arith.constant dense<0.000000e+00> : vector<1xf32>
    %425 = vector.multi_reduction <add>, %424, %cst_76 [1, 2, 3] : vector<1x2x1x128xf32> to vector<1xf32>
    %426 = vector.shape_cast %425 : vector<1xf32> to vector<1x1x1x1xf32>
    %427 = vector.extract %426[0, 0, 0, 0] : f32 from vector<1x1x1x1xf32>
    %c0_77 = arith.constant 0 : index
    %c0_78 = arith.constant 0 : index
    %c0_79 = arith.constant 0 : index
    %428 = vector.load %arg4[%c0_77, %c0_78, %c0_79] : memref<2x128x1xi32, #tpu.memory_space<vmem>>, vector<2x128x1xi32>
    %c0_i32_80 = arith.constant 0 : i32
    %429 = vector.broadcast %c0_i32_80 : i32 to vector<2x128x1xi32>
    %430 = arith.cmpi sgt, %428, %429 : vector<2x128x1xi32>
    %c0_81 = arith.constant 0 : index
    %c0_82 = arith.constant 0 : index
    %c0_83 = arith.constant 0 : index
    %431 = vector.load %arg2[%c0_81, %c0_82, %c0_83] : memref<2x128x4xf32, #tpu.memory_space<vmem>>, vector<2x128x4xf32>
    %c0_84 = arith.constant 0 : index
    %c0_85 = arith.constant 0 : index
    %c0_86 = arith.constant 0 : index
    %432 = vector.load %arg3[%c0_84, %c0_85, %c0_86] : memref<2x128x4xf32, #tpu.memory_space<vmem>>, vector<2x128x4xf32>
    %433 = arith.subf %431, %432 : vector<2x128x4xf32>
    %434 = math.absf %433 : vector<2x128x4xf32>
    %cst_87 = arith.constant 1.000000e+00 : f32
    %435 = vector.broadcast %cst_87 : f32 to vector<2x128x4xf32>
    %436 = arith.cmpf olt, %434, %435 : vector<2x128x4xf32>
    %cst_88 = arith.constant 5.000000e-01 : f32
    %437 = vector.broadcast %cst_88 : f32 to vector<2x128x4xf32>
    %438 = arith.mulf %437, %434 : vector<2x128x4xf32>
    %439 = arith.mulf %438, %434 : vector<2x128x4xf32>
    %cst_89 = arith.constant 5.000000e-01 : f32
    %440 = vector.broadcast %cst_89 : f32 to vector<2x128x4xf32>
    %441 = arith.subf %434, %440 : vector<2x128x4xf32>
    %442 = arith.select %436, %439, %441 : vector<2x128x4xi1>, vector<2x128x4xf32>
    %cst_90 = arith.constant 0.000000e+00 : f32
    %443 = vector.shape_cast %430 : vector<2x128x1xi1> to vector<2x128x1xi1>
    %444 = vector.broadcast %443 : vector<2x128x1xi1> to vector<2x128x4xi1>
    %445 = vector.broadcast %cst_90 : f32 to vector<2x128x4xf32>
    %446 = arith.select %444, %442, %445 : vector<2x128x4xi1>, vector<2x128x4xf32>
    %447 = vector.shape_cast %446 : vector<2x128x4xf32> to vector<1x2x128x4xf32>
    %cst_91 = arith.constant dense<0.000000e+00> : vector<1xf32>
    %448 = vector.multi_reduction <add>, %447, %cst_91 [1, 2, 3] : vector<1x2x128x4xf32> to vector<1xf32>
    %449 = vector.shape_cast %448 : vector<1xf32> to vector<1x1x1x1xf32>
    %450 = vector.extract %449[0, 0, 0, 0] : f32 from vector<1x1x1x1xf32>
    %451 = vector.shape_cast %30 : vector<2x1x1xi32> to vector<1x2x1x1xi32>
    %cst_92 = arith.constant dense<0> : vector<1xi32>
    %452 = vector.multi_reduction <add>, %451, %cst_92 [1, 2, 3] : vector<1x2x1x1xi32> to vector<1xi32>
    %453 = vector.shape_cast %452 : vector<1xi32> to vector<1x1x1x1xi32>
    %454 = vector.extract %453[0, 0, 0, 0] : i32 from vector<1x1x1x1xi32>
    %455 = arith.sitofp %454 : i32 to f32
    %456 = tpu.iota {dimensions = array<i32: 1>} : vector<1x128xi32>
    %c0_i32_93 = arith.constant 0 : i32
    %457 = vector.broadcast %c0_i32_93 : i32 to vector<1x128xi32>
    %458 = arith.cmpi eq, %456, %457 : vector<1x128xi32>
    %cst_94 = arith.constant 0.000000e+00 : f32
    %459 = vector.broadcast %450 : f32 to vector<1x128xf32>
    %460 = vector.broadcast %cst_94 : f32 to vector<1x128xf32>
    %461 = arith.select %458, %459, %460 : vector<1x128xi1>, vector<1x128xf32>
    %c1_i32_95 = arith.constant 1 : i32
    %462 = vector.broadcast %c1_i32_95 : i32 to vector<1x128xi32>
    %463 = arith.cmpi eq, %456, %462 : vector<1x128xi32>
    %cst_96 = arith.constant 0.000000e+00 : f32
    %464 = vector.broadcast %427 : f32 to vector<1x128xf32>
    %465 = vector.broadcast %cst_96 : f32 to vector<1x128xf32>
    %466 = arith.select %463, %464, %465 : vector<1x128xi1>, vector<1x128xf32>
    %467 = arith.addf %461, %466 : vector<1x128xf32>
    %c2_i32 = arith.constant 2 : i32
    %468 = vector.broadcast %c2_i32 : i32 to vector<1x128xi32>
    %469 = arith.cmpi eq, %456, %468 : vector<1x128xi32>
    %cst_97 = arith.constant 0.000000e+00 : f32
    %470 = vector.broadcast %455 : f32 to vector<1x128xf32>
    %471 = vector.broadcast %cst_97 : f32 to vector<1x128xf32>
    %472 = arith.select %469, %470, %471 : vector<1x128xi1>, vector<1x128xf32>
    %473 = arith.addf %467, %472 : vector<1x128xf32>
    %c0_98 = arith.constant 0 : index
    %c0_99 = arith.constant 0 : index
    %c0_100 = arith.constant 0 : index
    %474 = vector.load %arg6[%c0_98, %c0_99, %c0_100] : memref<1x1x128xf32, #tpu.memory_space<vmem>>, vector<1x1x128xf32>
    %475 = vector.shape_cast %474 : vector<1x1x128xf32> to vector<1x128xf32>
    %476 = vector.shape_cast %473 : vector<1x128xf32> to vector<1x1x128xf32>
    tpu.vector_store %arg6[%c0_98, %c0_99, %c0_100], %476 {strides = array<i32>} : memref<1x1x128xf32, #tpu.memory_space<vmem>>, vector<1x1x128xf32>,
    return
  }
  func.func @transform_0(%arg0: i32) -> (i32, i32, i32) {
    %c0_i32 = arith.constant 0 : i32
    %c0_i32_0 = arith.constant 0 : i32
    %c0_i32_1 = arith.constant 0 : i32
    return %arg0, %c0_i32, %c0_i32_0 : i32, i32, i32
  }
  func.func @transform_1(%arg0: i32) -> (i32, i32, i32) {
    %c0_i32 = arith.constant 0 : i32
    %c0_i32_0 = arith.constant 0 : i32
    %c0_i32_1 = arith.constant 0 : i32
    return %arg0, %c0_i32, %c0_i32_0 : i32, i32, i32
  }
  func.func @transform_2(%arg0: i32) -> (i32, i32, i32) {
    %c0_i32 = arith.constant 0 : i32
    %c0_i32_0 = arith.constant 0 : i32
    %c0_i32_1 = arith.constant 0 : i32
    return %arg0, %c0_i32, %c0_i32_0 : i32, i32, i32
  }
  func.func @transform_3(%arg0: i32) -> (i32, i32, i32) {
    %c0_i32 = arith.constant 0 : i32
    %c0_i32_0 = arith.constant 0 : i32
    %c0_i32_1 = arith.constant 0 : i32
    return %arg0, %c0_i32, %c0_i32_0 : i32, i32, i32
  }
  func.func @transform_4(%arg0: i32) -> (i32, i32, i32) {
    %c0_i32 = arith.constant 0 : i32
    %c0_i32_0 = arith.constant 0 : i32
    %c0_i32_1 = arith.constant 0 : i32
    return %arg0, %c0_i32, %c0_i32_0 : i32, i32, i32
  }
  func.func @transform_5(%arg0: i32) -> (i32, i32, i32) {
    %c0_i32 = arith.constant 0 : i32
    %c0_i32_0 = arith.constant 0 : i32
    %c0_i32_1 = arith.constant 0 : i32
    return %arg0, %c0_i32, %c0_i32_0 : i32, i32, i32
  }
}

</mosaic_0001>

<llo_original>
// kernel: tpu_custom_call.1
$region0: #{tpu_custom_call.1}
  #allocation0 [shape = 'u32[]', space=smem, size = 0x4, offset = 0x4, fixed_abs, tag = 'smem constant byte address 0x4 - core index']
  #allocation1 [shape = 'u32[144,128]{1,0:T(1,128)}', space=vmem, size = 0x12000, scoped, tag = 'internal scratch']
  %s0 = inlined_call_operand.vmem [shape: f32[2,128,8], index: 0, kind: input, shape index: {}]
  %s1 = inlined_call_operand.vmem [shape: f32[2,128,4], index: 1, kind: input, shape index: {}]
  %s2 = inlined_call_operand.vmem [shape: f32[2,128,4], index: 2, kind: input, shape index: {}]
  %s3 = inlined_call_operand.vmem [shape: s32[2,128,1], index: 3, kind: input, shape index: {}]
  %s4 = inlined_call_operand.vmem [shape: s32[2,1,128], index: 4, kind: input, shape index: {}]
  %s5 = inlined_call_operand.hbm [shape: f32[1,1,128], index: 5, kind: output, shape index: {}]
  %s6 = sld [smem:[#allocation0]]
  $region30: #{tpu_custom_call.1} parent=0
    _
  %s8 = ssub.s32 1, %s6
  %s9 = scalar_select 0, %s8, %s6
  $region1: #{tpu_custom_call.1} parent=0
    #allocation2 [shape = 'u8[512]{0}', space=vmem, size = 0x400, scoped, tag = 'output window, operand 0, single buffered']
    #allocation3 [shape = 's32[1]{0}', space=sflag, size = 0x4, scoped, tag = 'scoped memory for tpu_custom_call.1']
    %10 = vsyncpa [#allocation3], 0
    // Predicated region
    $region2: #{tpu_custom_call.1} parent=1 // pred_check
      _
    $region3: #{tpu_custom_call.1} parent=1 // pred_check_branch
      %12 = sbr.rel (0) target = $region5
    $region4: #{tpu_custom_call.1} parent=1 // pred_region
      _
    $region5: #{tpu_custom_call.1} parent=1 // pred_fallthru
      _
    // Predicated region
    $region6: #{tpu_custom_call.1} parent=1 // pred_check
      _
    $region7: #{tpu_custom_call.1} parent=1 // pred_check_branch
      %14 = sbr.rel (0) target = $region9
    $region8: #{tpu_custom_call.1} parent=1 // pred_region
      _
    $region9: #{tpu_custom_call.1} parent=1 // pred_fallthru
      _
    // Predicated region
    $region10: #{tpu_custom_call.1} parent=1 // pred_check
      _
    $region11: #{tpu_custom_call.1} parent=1 // pred_check_branch
      %16 = sbr.rel (0) target = $region13
    $region12: #{tpu_custom_call.1} parent=1 // pred_region
      _
    $region13: #{tpu_custom_call.1} parent=1 // pred_fallthru
      _
    // Predicated region
    $region14: #{tpu_custom_call.1} parent=1 // pred_check
      _
    $region15: #{tpu_custom_call.1} parent=1 // pred_check_branch
      %18 = sbr.rel (0) target = $region17
    $region16: #{tpu_custom_call.1} parent=1 // pred_region
      _
    $region17: #{tpu_custom_call.1} parent=1 // pred_fallthru
      _
    // Predicated region
    $region18: #{tpu_custom_call.1} parent=1 // pred_check
      _
    $region19: #{tpu_custom_call.1} parent=1 // pred_check_branch
      %20 = sbr.rel (0) target = $region21
    $region20: #{tpu_custom_call.1} parent=1 // pred_region
      _
    $region21: #{tpu_custom_call.1} parent=1 // pred_fallthru
      _
    %v21 = vld [vmem:[%s0] sm:$0xff]
    %v22 = vld [vmem:[%s0 + $0x8] sm:$0xff]
    %v23 = vld [vmem:[%s0 + $0x10] sm:$0xff]
    %v24 = vld [vmem:[%s0 + $0x18] sm:$0xff]
    %v25 = vld [vmem:[%s0 + $0x20] sm:$0xff]
    %v26 = vld [vmem:[%s0 + $0x28] sm:$0xff]
    %v27 = vld [vmem:[%s0 + $0x30] sm:$0xff]
    %v28 = vld [vmem:[%s0 + $0x38] sm:$0xff]
    %v29 = vld [vmem:[%s0 + $0x40] sm:$0xff]
    %v30 = vld [vmem:[%s0 + $0x48] sm:$0xff]
    %v31 = vld [vmem:[%s0 + $0x50] sm:$0xff]
    %v32 = vld [vmem:[%s0 + $0x58] sm:$0xff]
    %v33 = vld [vmem:[%s0 + $0x60] sm:$0xff]
    %v34 = vld [vmem:[%s0 + $0x68] sm:$0xff]
    %v35 = vld [vmem:[%s0 + $0x70] sm:$0xff]
    %v36 = vld [vmem:[%s0 + $0x78] sm:$0xff]
    %v37 = vld [vmem:[%s0 + $0x80] sm:$0xff]
    %v38 = vld [vmem:[%s0 + $0x88] sm:$0xff]
    %v39 = vld [vmem:[%s0 + $0x90] sm:$0xff]
    %v40 = vld [vmem:[%s0 + $0x98] sm:$0xff]
    %v41 = vld [vmem:[%s0 + $0xa0] sm:$0xff]
    %v42 = vld [vmem:[%s0 + $0xa8] sm:$0xff]
    %v43 = vld [vmem:[%s0 + $0xb0] sm:$0xff]
    %v44 = vld [vmem:[%s0 + $0xb8] sm:$0xff]
    %v45 = vld [vmem:[%s0 + $0xc0] sm:$0xff]
    %v46 = vld [vmem:[%s0 + $0xc8] sm:$0xff]
    %v47 = vld [vmem:[%s0 + $0xd0] sm:$0xff]
    %v48 = vld [vmem:[%s0 + $0xd8] sm:$0xff]
    %v49 = vld [vmem:[%s0 + $0xe0] sm:$0xff]
    %v50 = vld [vmem:[%s0 + $0xe8] sm:$0xff]
    %v51 = vld [vmem:[%s0 + $0xf0] sm:$0xff]
    %v52 = vld [vmem:[%s0 + $0xf8] sm:$0xff]
    %53 = vxpose.xlu0.b32.start [1/16] %v21, 128
    %54 = vxpose.xlu0.b32.cont [2/16] %v22, 128
    %55 = vxpose.xlu0.b32.cont [3/16] %v23, 128
    %56 = vxpose.xlu0.b32.cont [4/16] %v24, 128
    %57 = vxpose.xlu0.b32.cont [5/16] %v25, 128
    %58 = vxpose.xlu0.b32.cont [6/16] %v26, 128
    %59 = vxpose.xlu0.b32.cont [7/16] %v27, 128
    %60 = vxpose.xlu0.b32.cont [8/16] %v28, 128
    %61 = vxpose.xlu0.b32.cont [9/16] %v29, 128
    %62 = vxpose.xlu0.b32.cont [10/16] %v30, 128
    %63 = vxpose.xlu0.b32.cont [11/16] %v31, 128
    %64 = vxpose.xlu0.b32.cont [12/16] %v32, 128
    %65 = vxpose.xlu0.b32.cont [13/16] %v33, 128
    %66 = vxpose.xlu0.b32.cont [14/16] %v34, 128
    %67 = vxpose.xlu0.b32.cont [15/16] %v35, 128
    %68 = vxpose.xlu0.b32.end [16/16] %v36, 128
    %v69 = vpop.trf.xlu0
    %v70 = vpop.trf.xlu0
    %v71 = vpop.trf.xlu0
    %v72 = vpop.trf.xlu0
    %v73 = vpop.trf.xlu0
    %v74 = vpop.trf.xlu0
    %v75 = vpop.trf.xlu0
    %v76 = vpop.trf.xlu0
    %v77 = vpop.trf.xlu0
    %v78 = vpop.trf.xlu0
    %v79 = vpop.trf.xlu0
    %v80 = vpop.trf.xlu0
    %v81 = vpop.trf.xlu0
    %v82 = vpop.trf.xlu0
    %v83 = vpop.trf.xlu0
    %v84 = vpop.trf.xlu0
    %85 = vxpose.xlu0.b32.start [1/16] %v37, 128
    %86 = vxpose.xlu0.b32.cont [2/16] %v38, 128
    %87 = vxpose.xlu0.b32.cont [3/16] %v39, 128
    %88 = vxpose.xlu0.b32.cont [4/16] %v40, 128
    %89 = vxpose.xlu0.b32.cont [5/16] %v41, 128
    %90 = vxpose.xlu0.b32.cont [6/16] %v42, 128
    %91 = vxpose.xlu0.b32.cont [7/16] %v43, 128
    %92 = vxpose.xlu0.b32.cont [8/16] %v44, 128
    %93 = vxpose.xlu0.b32.cont [9/16] %v45, 128
    %94 = vxpose.xlu0.b32.cont [10/16] %v46, 128
    %95 = vxpose.xlu0.b32.cont [11/16] %v47, 128
    %96 = vxpose.xlu0.b32.cont [12/16] %v48, 128
    %97 = vxpose.xlu0.b32.cont [13/16] %v49, 128
    %98 = vxpose.xlu0.b32.cont [14/16] %v50, 128
    %99 = vxpose.xlu0.b32.cont [15/16] %v51, 128
    %100 = vxpose.xlu0.b32.end [16/16] %v52, 128
    %v101 = vpop.trf.xlu0
    %v102 = vpop.trf.xlu0
    %v103 = vpop.trf.xlu0
    %v104 = vpop.trf.xlu0
    %v105 = vpop.trf.xlu0
    %v106 = vpop.trf.xlu0
    %v107 = vpop.trf.xlu0
    %v108 = vpop.trf.xlu0
    %v109 = vpop.trf.xlu0
    %v110 = vpop.trf.xlu0
    %v111 = vpop.trf.xlu0
    %v112 = vpop.trf.xlu0
    %v113 = vpop.trf.xlu0
    %v114 = vpop.trf.xlu0
    %v115 = vpop.trf.xlu0
    %v116 = vpop.trf.xlu0
    %v117 = vld [vmem:[%s4] sm:$0x1]
    %v118 = vld [vmem:[%s4 + $0x1] sm:$0x1]
    %v119 = vrot.slane %v69, 4
    %v120 = vmax.f32 %v69, %v119
    %v121 = vrot.slane %v120, 2
    %v122 = vmax.f32 %v120, %v121
    %v123 = vrot.slane %v122, 1
    %v124 = vmax.f32 %v122, %v123
    %v125 = vrot.slane %v101, 4
    %v126 = vmax.f32 %v101, %v125
    %v127 = vrot.slane %v126, 2
    %v128 = vmax.f32 %v126, %v127
    %v129 = vrot.slane %v128, 1
    %v130 = vmax.f32 %v128, %v129
    %v131 = vsub.f32 %v69, %v124
    %v132 = vsub.f32 %v101, %v130
    %v133 = vmul.f32 %v131, 1.442695
    %v134 = vpow.pop %v133
    %v135 = vmul.f32 %v132, 1.442695
    %v136 = vpow.pop %v135
    %v137 = vrot.slane %v134, 4
    %v138 = vadd.f32 %v134, %v137
    %v139 = vrot.slane %v138, 2
    %v140 = vadd.f32 %v138, %v139
    %v141 = vrot.slane %v140, 1
    %v142 = vadd.f32 %v140, %v141
    %v143 = vrot.slane %v136, 4
    %v144 = vadd.f32 %v136, %v143
    %v145 = vrot.slane %v144, 2
    %v146 = vadd.f32 %v144, %v145
    %v147 = vrot.slane %v146, 1
    %v148 = vadd.f32 %v146, %v147
    %v149 = vlog2.pop %v142
    %v150 = vmul.f32 %v149, 0.6931472
    %v151 = vlog2.pop %v148
    %v152 = vmul.f32 %v151, 0.6931472
    %v153 = vadd.f32 %v124, %v150
    %v154 = vadd.f32 %v130, %v152
    %v155 = vlaneseq
    %v156 = vshrl.u32 %v155, 7
    %v157 = vlaneseq
    %v158 = vshrl.u32 %v157, 7
    %v159 = vsub.s32 0, %v158
    %v160 = vrot.slane %v117, %v159
    %v161 = vlaneseq
    %v162 = vshrl.u32 %v161, 7
    %v163 = vsub.s32 0, %v162
    %v164 = vrot.slane %v118, %v163
    %vm165 = vcmp.eq.s32.totalorder %v156, %v160
    %vm166 = vcmp.eq.s32.totalorder %v156, %v164
    %v167 = vsel %vm165, %v69, 0.0
    %v168 = vsel %vm166, %v101, 0.0
    %v169 = vrot.slane %v167, 4
    %v170 = vadd.f32 %v167, %v169
    %v171 = vrot.slane %v170, 2
    %v172 = vadd.f32 %v170, %v171
    %v173 = vrot.slane %v172, 1
    %v174 = vadd.f32 %v172, %v173
    %v175 = vrot.slane %v168, 4
    %v176 = vadd.f32 %v168, %v175
    %v177 = vrot.slane %v176, 2
    %v178 = vadd.f32 %v176, %v177
    %v179 = vrot.slane %v178, 1
    %v180 = vadd.f32 %v178, %v179
    %v181 = vsub.f32 %v153, %v174
    %v182 = vsub.f32 %v154, %v180
    %v183 = vsub.f32 %v153, %v69
    %v184 = vsub.f32 %v154, %v101
    %v185 = vlaneseq
    %v186 = vand.u32 %v185, 127
    %vm187 = vcmp.lt.s32.totalorder %v186, 64
    %vm188 = vcmp.gt.s32.totalorder %v117, 0
    %vm189 = vcmp.gt.s32.totalorder %v118, 0
    %vm190 = vmand %vm188, %vm187
    %vm191 = vmand %vm189, %vm187
    %v192 = vsel %vm190, 1, 0
    %v193 = vsel %vm191, 1, 0
    %vm194 = vcmask 1040384
    %v195 = vsel %vm194, %v192, 0
    %v196 = vand.u32 %v195, 65535
    %v197 = vshrl.u32 %v195, 16
    %v198 = vcvt.s32.f32 %v196
    %v199 = vcvt.s32.f32 %v197
    %200 = vadd.xlane.f32.xlu0 %v198
    %v201 = vpop.xlane.xlu0 %200
    %202 = vadd.xlane.f32.xlu0 %v199
    %v203 = vpop.xlane.xlu0 %202
    %v204 = vcvt.f32.s32 %v201
    %v205 = vcvt.f32.s32 %v203
    %v206 = vshll.u32 %v205, 16
    %v207 = vadd.s32 %v206, %v204
    %v208 = vsel %vm194, %v193, 0
    %v209 = vand.u32 %v208, 65535
    %v210 = vshrl.u32 %v208, 16
    %v211 = vcvt.s32.f32 %v209
    %v212 = vcvt.s32.f32 %v210
    %213 = vadd.xlane.f32.xlu0 %v211
    %v214 = vpop.xlane.xlu0 %213
    %215 = vadd.xlane.f32.xlu0 %v212
    %v216 = vpop.xlane.xlu0 %215
    %v217 = vcvt.f32.s32 %v214
    %v218 = vcvt.f32.s32 %v216
    %v219 = vshll.u32 %v218, 16
    %v220 = vadd.s32 %v219, %v217
    %v221 = vmul.u32 %v207, 3
    %v222 = vmul.u32 %v220, 3
    %vm223 = vcmp.gt.s32.totalorder %v221, 1
    %v224 = vsel %vm223, %v221, 1
    %vm225 = vcmp.gt.s32.totalorder %v222, 1
    %v226 = vsel %vm225, %v222, 1
    %vm227 = vcmp.lt.s32.totalorder %v224, 64
    %v228 = vsel %vm227, %v224, 64
    %vm229 = vcmp.lt.s32.totalorder %v226, 64
    %v230 = vsel %vm229, %v226, 64
    %vm233 = vmxor %vm187, 1
    %vm234 = vmor %vm190, %vm233
    %vm235 = vmor %vm191, %vm233
    %v236 = vsel %vm234, 4294967295, %v183
    %v237 = vsel %vm235, 4294967295, %v184
    %vm238 = vcmp.ge.s32.totalorder %v236, 1069547520
    %vm239 = vcmp.ge.s32.totalorder %v237, 1069547520
    %v240 = vsel %vm238, 1, 0
    %v241 = vsel %vm239, 1, 0
    %v242 = vsel %vm194, %v240, 0
    %v243 = vand.u32 %v242, 65535
    %v244 = vshrl.u32 %v242, 16
    %v245 = vcvt.s32.f32 %v243
    %v246 = vcvt.s32.f32 %v244
    %247 = vadd.xlane.f32.xlu0 %v245
    %v248 = vpop.xlane.xlu0 %247
    %249 = vadd.xlane.f32.xlu0 %v246
    %v250 = vpop.xlane.xlu0 %249
    %v251 = vcvt.f32.s32 %v248
    %v252 = vcvt.f32.s32 %v250
    %v253 = vshll.u32 %v252, 16
    %v254 = vadd.s32 %v253, %v251
    %v255 = vsel %vm194, %v241, 0
    %v256 = vand.u32 %v255, 65535
    %v257 = vshrl.u32 %v255, 16
    %v258 = vcvt.s32.f32 %v256
    %v259 = vcvt.s32.f32 %v257
    %260 = vadd.xlane.f32.xlu0 %v258
    %v261 = vpop.xlane.xlu0 %260
    %262 = vadd.xlane.f32.xlu0 %v259
    %v263 = vpop.xlane.xlu0 %262
    %v264 = vcvt.f32.s32 %v261
    %v265 = vcvt.f32.s32 %v263
    %v266 = vshll.u32 %v265, 16
    %v267 = vadd.s32 %v266, %v264
    %vm268 = vcmp.ge.s32.totalorder %v254, %v228
    %vm269 = vcmp.ge.s32.totalorder %v267, %v230
    %v270 = vsel %vm268, 1069547520, 0
    %v271 = vsel %vm269, 1069547520, 0
    %v272 = vsel %vm268, 2139095041, 1069547520
    %v273 = vsel %vm269, 2139095041, 1069547520
    %v274 = vsub.s32 %v272, %v270
    %v275 = vsub.s32 %v273, %v271
    %v276 = vshra.s32 %v274, 1
    %v277 = vshra.s32 %v275, 1
    %v278 = vadd.s32 %v270, %v276
    %v279 = vadd.s32 %v271, %v277
    %vm280 = vcmp.ge.s32.totalorder %v236, %v278
    %vm281 = vcmp.ge.s32.totalorder %v237, %v279
    %v282 = vsel %vm280, 1, 0
    %v283 = vsel %vm281, 1, 0
    %v284 = vsel %vm194, %v282, 0
    %v285 = vand.u32 %v284, 65535
    %v286 = vshrl.u32 %v284, 16
    %v287 = vcvt.s32.f32 %v285
    %v288 = vcvt.s32.f32 %v286
    %289 = vadd.xlane.f32.xlu0 %v287
    %v290 = vpop.xlane.xlu0 %289
    %291 = vadd.xlane.f32.xlu0 %v288
    %v292 = vpop.xlane.xlu0 %291
    %v293 = vcvt.f32.s32 %v290
    %v294 = vcvt.f32.s32 %v292
    %v295 = vshll.u32 %v294, 16
    %v296 = vadd.s32 %v295, %v293
    %v297 = vsel %vm194, %v283, 0
    %v298 = vand.u32 %v297, 65535
    %v299 = vshrl.u32 %v297, 16
    %v300 = vcvt.s32.f32 %v298
    %v301 = vcvt.s32.f32 %v299
    %302 = vadd.xlane.f32.xlu0 %v300
    %v303 = vpop.xlane.xlu0 %302
    %304 = vadd.xlane.f32.xlu0 %v301
    %v305 = vpop.xlane.xlu0 %304
    %v306 = vcvt.f32.s32 %v303
    %v307 = vcvt.f32.s32 %v305
    %v308 = vshll.u32 %v307, 16
    %v309 = vadd.s32 %v308, %v306
    %vm310 = vcmp.ge.s32.totalorder %v296, %v228
    %vm311 = vcmp.ge.s32.totalorder %v309, %v230
    %v312 = vsel %vm310, %v278, %v270
    %v313 = vsel %vm311, %v279, %v271
    %v314 = vsel %vm310, %v272, %v278
    %v315 = vsel %vm311, %v273, %v279
    %v316 = vsub.s32 %v314, %v312
    %v317 = vsub.s32 %v315, %v313
    %v318 = vshra.s32 %v316, 1
    %v319 = vshra.s32 %v317, 1
    %v320 = vadd.s32 %v312, %v318
    %v321 = vadd.s32 %v313, %v319
    %vm322 = vcmp.ge.s32.totalorder %v236, %v320
    %vm323 = vcmp.ge.s32.totalorder %v237, %v321
    %v324 = vsel %vm322, 1, 0
    %v325 = vsel %vm323, 1, 0
    %v326 = vsel %vm194, %v324, 0
    %v327 = vand.u32 %v326, 65535
    %v328 = vshrl.u32 %v326, 16
    %v329 = vcvt.s32.f32 %v327
    %v330 = vcvt.s32.f32 %v328
    %331 = vadd.xlane.f32.xlu0 %v329
    %v332 = vpop.xlane.xlu0 %331
    %333 = vadd.xlane.f32.xlu0 %v330
    %v334 = vpop.xlane.xlu0 %333
    %v335 = vcvt.f32.s32 %v332
    %v336 = vcvt.f32.s32 %v334
    %v337 = vshll.u32 %v336, 16
    %v338 = vadd.s32 %v337, %v335
    %v339 = vsel %vm194, %v325, 0
    %v340 = vand.u32 %v339, 65535
    %v341 = vshrl.u32 %v339, 16
    %v342 = vcvt.s32.f32 %v340
    %v343 = vcvt.s32.f32 %v341
    %344 = vadd.xlane.f32.xlu0 %v342
    %v345 = vpop.xlane.xlu0 %344
    %346 = vadd.xlane.f32.xlu0 %v343
    %v347 = vpop.xlane.xlu0 %346
    %v348 = vcvt.f32.s32 %v345
    %v349 = vcvt.f32.s32 %v347
    %v350 = vshll.u32 %v349, 16
    %v351 = vadd.s32 %v350, %v348
    %vm352 = vcmp.ge.s32.totalorder %v338, %v228
    %vm353 = vcmp.ge.s32.totalorder %v351, %v230
    %v354 = vsel %vm352, %v320, %v312
    %v355 = vsel %vm353, %v321, %v313
    %v356 = vsel %vm352, %v314, %v320
    %v357 = vsel %vm353, %v315, %v321
    %v358 = vsub.s32 %v356, %v354
    %v359 = vsub.s32 %v357, %v355
    %v360 = vshra.s32 %v358, 1
    %v361 = vshra.s32 %v359, 1
    %v362 = vadd.s32 %v354, %v360
    %v363 = vadd.s32 %v355, %v361
    %vm364 = vcmp.ge.s32.totalorder %v236, %v362
    %vm365 = vcmp.ge.s32.totalorder %v237, %v363
    %v366 = vsel %vm364, 1, 0
    %v367 = vsel %vm365, 1, 0
    %v368 = vsel %vm194, %v366, 0
    %v369 = vand.u32 %v368, 65535
    %v370 = vshrl.u32 %v368, 16
    %v371 = vcvt.s32.f32 %v369
    %v372 = vcvt.s32.f32 %v370
    %373 = vadd.xlane.f32.xlu0 %v371
    %v374 = vpop.xlane.xlu0 %373
    %375 = vadd.xlane.f32.xlu0 %v372
    %v376 = vpop.xlane.xlu0 %375
    %v377 = vcvt.f32.s32 %v374
    %v378 = vcvt.f32.s32 %v376
    %v379 = vshll.u32 %v378, 16
    %v380 = vadd.s32 %v379, %v377
    %v381 = vsel %vm194, %v367, 0
    %v382 = vand.u32 %v381, 65535
    %v383 = vshrl.u32 %v381, 16
    %v384 = vcvt.s32.f32 %v382
    %v385 = vcvt.s32.f32 %v383
    %386 = vadd.xlane.f32.xlu0 %v384
    %v387 = vpop.xlane.xlu0 %386
    %388 = vadd.xlane.f32.xlu0 %v385
    %v389 = vpop.xlane.xlu0 %388
    %v390 = vcvt.f32.s32 %v387
    %v391 = vcvt.f32.s32 %v389
    %v392 = vshll.u32 %v391, 16
    %v393 = vadd.s32 %v392, %v390
    %vm394 = vcmp.ge.s32.totalorder %v380, %v228
    %vm395 = vcmp.ge.s32.totalorder %v393, %v230
    %v396 = vsel %vm394, %v362, %v354
    %v397 = vsel %vm395, %v363, %v355
    %v398 = vsel %vm394, %v356, %v362
    %v399 = vsel %vm395, %v357, %v363
    %v400 = vsub.s32 %v398, %v396
    %v401 = vsub.s32 %v399, %v397
    %v402 = vshra.s32 %v400, 1
    %v403 = vshra.s32 %v401, 1
    %v404 = vadd.s32 %v396, %v402
    %v405 = vadd.s32 %v397, %v403
    %vm406 = vcmp.ge.s32.totalorder %v236, %v404
    %vm407 = vcmp.ge.s32.totalorder %v237, %v405
    %v408 = vsel %vm406, 1, 0
    %v409 = vsel %vm407, 1, 0
    %v410 = vsel %vm194, %v408, 0
    %v411 = vand.u32 %v410, 65535
    %v412 = vshrl.u32 %v410, 16
    %v413 = vcvt.s32.f32 %v411
    %v414 = vcvt.s32.f32 %v412
    %415 = vadd.xlane.f32.xlu0 %v413
    %v416 = vpop.xlane.xlu0 %415
    %417 = vadd.xlane.f32.xlu0 %v414
    %v418 = vpop.xlane.xlu0 %417
    %v419 = vcvt.f32.s32 %v416
    %v420 = vcvt.f32.s32 %v418
    %v421 = vshll.u32 %v420, 16
    %v422 = vadd.s32 %v421, %v419
    %v423 = vsel %vm194, %v409, 0
    %v424 = vand.u32 %v423, 65535
    %v425 = vshrl.u32 %v423, 16
    %v426 = vcvt.s32.f32 %v424
    %v427 = vcvt.s32.f32 %v425
    %428 = vadd.xlane.f32.xlu0 %v426
    %v429 = vpop.xlane.xlu0 %428
    %430 = vadd.xlane.f32.xlu0 %v427
    %v431 = vpop.xlane.xlu0 %430
    %v432 = vcvt.f32.s32 %v429
    %v433 = vcvt.f32.s32 %v431
    %v434 = vshll.u32 %v433, 16
    %v435 = vadd.s32 %v434, %v432
    %vm436 = vcmp.ge.s32.totalorder %v422, %v228
    %vm437 = vcmp.ge.s32.totalorder %v435, %v230
    %v438 = vsel %vm436, %v404, %v396
    %v439 = vsel %vm437, %v405, %v397
    %v440 = vsel %vm436, %v398, %v404
    %v441 = vsel %vm437, %v399, %v405
    %v442 = vsub.s32 %v440, %v438
    %v443 = vsub.s32 %v441, %v439
    %v444 = vshra.s32 %v442, 1
    %v445 = vshra.s32 %v443, 1
    %v446 = vadd.s32 %v438, %v444
    %v447 = vadd.s32 %v439, %v445
    %vm448 = vcmp.ge.s32.totalorder %v236, %v446
    %vm449 = vcmp.ge.s32.totalorder %v237, %v447
    %v450 = vsel %vm448, 1, 0
    %v451 = vsel %vm449, 1, 0
    %v452 = vsel %vm194, %v450, 0
    %v453 = vand.u32 %v452, 65535
    %v454 = vshrl.u32 %v452, 16
    %v455 = vcvt.s32.f32 %v453
    %v456 = vcvt.s32.f32 %v454
    %457 = vadd.xlane.f32.xlu0 %v455
    %v458 = vpop.xlane.xlu0 %457
    %459 = vadd.xlane.f32.xlu0 %v456
    %v460 = vpop.xlane.xlu0 %459
    %v461 = vcvt.f32.s32 %v458
    %v462 = vcvt.f32.s32 %v460
    %v463 = vshll.u32 %v462, 16
    %v464 = vadd.s32 %v463, %v461
    %v465 = vsel %vm194, %v451, 0
    %v466 = vand.u32 %v465, 65535
    %v467 = vshrl.u32 %v465, 16
    %v468 = vcvt.s32.f32 %v466
    %v469 = vcvt.s32.f32 %v467
    %470 = vadd.xlane.f32.xlu0 %v468
    %v471 = vpop.xlane.xlu0 %470
    %472 = vadd.xlane.f32.xlu0 %v469
    %v473 = vpop.xlane.xlu0 %472
    %v474 = vcvt.f32.s32 %v471
    %v475 = vcvt.f32.s32 %v473
    %v476 = vshll.u32 %v475, 16
    %v477 = vadd.s32 %v476, %v474
    %vm478 = vcmp.ge.s32.totalorder %v464, %v228
    %vm479 = vcmp.ge.s32.totalorder %v477, %v230
    %v480 = vsel %vm478, %v446, %v438
    %v481 = vsel %vm479, %v447, %v439
    %v482 = vsel %vm478, %v440, %v446
    %v483 = vsel %vm479, %v441, %v447
    %v484 = vsub.s32 %v482, %v480
    %v485 = vsub.s32 %v483, %v481
    %v486 = vshra.s32 %v484, 1
    %v487 = vshra.s32 %v485, 1
    %v488 = vadd.s32 %v480, %v486
    %v489 = vadd.s32 %v481, %v487
    %vm490 = vcmp.ge.s32.totalorder %v236, %v488
    %vm491 = vcmp.ge.s32.totalorder %v237, %v489
    %v492 = vsel %vm490, 1, 0
    %v493 = vsel %vm491, 1, 0
    %v494 = vsel %vm194, %v492, 0
    %v495 = vand.u32 %v494, 65535
    %v496 = vshrl.u32 %v494, 16
    %v497 = vcvt.s32.f32 %v495
    %v498 = vcvt.s32.f32 %v496
    %499 = vadd.xlane.f32.xlu0 %v497
    %v500 = vpop.xlane.xlu0 %499
    %501 = vadd.xlane.f32.xlu0 %v498
    %v502 = vpop.xlane.xlu0 %501
    %v503 = vcvt.f32.s32 %v500
    %v504 = vcvt.f32.s32 %v502
    %v505 = vshll.u32 %v504, 16
    %v506 = vadd.s32 %v505, %v503
    %v507 = vsel %vm194, %v493, 0
    %v508 = vand.u32 %v507, 65535
    %v509 = vshrl.u32 %v507, 16
    %v510 = vcvt.s32.f32 %v508
    %v511 = vcvt.s32.f32 %v509
    %512 = vadd.xlane.f32.xlu0 %v510
    %v513 = vpop.xlane.xlu0 %512
    %514 = vadd.xlane.f32.xlu0 %v511
    %v515 = vpop.xlane.xlu0 %514
    %v516 = vcvt.f32.s32 %v513
    %v517 = vcvt.f32.s32 %v515
    %v518 = vshll.u32 %v517, 16
    %v519 = vadd.s32 %v518, %v516
    %vm520 = vcmp.ge.s32.totalorder %v506, %v228
    %vm521 = vcmp.ge.s32.totalorder %v519, %v230
    %v522 = vsel %vm520, %v488, %v480
    %v523 = vsel %vm521, %v489, %v481
    %v524 = vsel %vm520, %v482, %v488
    %v525 = vsel %vm521, %v483, %v489
    %v526 = vsub.s32 %v524, %v522
    %v527 = vsub.s32 %v525, %v523
    %v528 = vshra.s32 %v526, 1
    %v529 = vshra.s32 %v527, 1
    %v530 = vadd.s32 %v522, %v528
    %v531 = vadd.s32 %v523, %v529
    %vm532 = vcmp.ge.s32.totalorder %v236, %v530
    %vm533 = vcmp.ge.s32.totalorder %v237, %v531
    %v534 = vsel %vm532, 1, 0
    %v535 = vsel %vm533, 1, 0
    %v536 = vsel %vm194, %v534, 0
    %v537 = vand.u32 %v536, 65535
    %v538 = vshrl.u32 %v536, 16
    %v539 = vcvt.s32.f32 %v537
    %v540 = vcvt.s32.f32 %v538
    %541 = vadd.xlane.f32.xlu0 %v539
    %v542 = vpop.xlane.xlu0 %541
    %543 = vadd.xlane.f32.xlu0 %v540
    %v544 = vpop.xlane.xlu0 %543
    %v545 = vcvt.f32.s32 %v542
    %v546 = vcvt.f32.s32 %v544
    %v547 = vshll.u32 %v546, 16
    %v548 = vadd.s32 %v547, %v545
    %v549 = vsel %vm194, %v535, 0
    %v550 = vand.u32 %v549, 65535
    %v551 = vshrl.u32 %v549, 16
    %v552 = vcvt.s32.f32 %v550
    %v553 = vcvt.s32.f32 %v551
    %554 = vadd.xlane.f32.xlu0 %v552
    %v555 = vpop.xlane.xlu0 %554
    %556 = vadd.xlane.f32.xlu0 %v553
    %v557 = vpop.xlane.xlu0 %556
    %v558 = vcvt.f32.s32 %v555
    %v559 = vcvt.f32.s32 %v557
    %v560 = vshll.u32 %v559, 16
    %v561 = vadd.s32 %v560, %v558
    %vm562 = vcmp.ge.s32.totalorder %v548, %v228
    %vm563 = vcmp.ge.s32.totalorder %v561, %v230
    %v564 = vsel %vm562, %v530, %v522
    %v565 = vsel %vm563, %v531, %v523
    %v566 = vsel %vm562, %v524, %v530
    %v567 = vsel %vm563, %v525, %v531
    %v568 = vsub.s32 %v566, %v564
    %v569 = vsub.s32 %v567, %v565
    %v570 = vshra.s32 %v568, 1
    %v571 = vshra.s32 %v569, 1
    %v572 = vadd.s32 %v564, %v570
    %v573 = vadd.s32 %v565, %v571
    %vm574 = vcmp.ge.s32.totalorder %v236, %v572
    %vm575 = vcmp.ge.s32.totalorder %v237, %v573
    %v576 = vsel %vm574, 1, 0
    %v577 = vsel %vm575, 1, 0
    %v578 = vsel %vm194, %v576, 0
    %v579 = vand.u32 %v578, 65535
    %v580 = vshrl.u32 %v578, 16
    %v581 = vcvt.s32.f32 %v579
    %v582 = vcvt.s32.f32 %v580
    %583 = vadd.xlane.f32.xlu0 %v581
    %v584 = vpop.xlane.xlu0 %583
    %585 = vadd.xlane.f32.xlu0 %v582
    %v586 = vpop.xlane.xlu0 %585
    %v587 = vcvt.f32.s32 %v584
    %v588 = vcvt.f32.s32 %v586
    %v589 = vshll.u32 %v588, 16
    %v590 = vadd.s32 %v589, %v587
    %v591 = vsel %vm194, %v577, 0
    %v592 = vand.u32 %v591, 65535
    %v593 = vshrl.u32 %v591, 16
    %v594 = vcvt.s32.f32 %v592
    %v595 = vcvt.s32.f32 %v593
    %596 = vadd.xlane.f32.xlu0 %v594
    %v597 = vpop.xlane.xlu0 %596
    %598 = vadd.xlane.f32.xlu0 %v595
    %v599 = vpop.xlane.xlu0 %598
    %v600 = vcvt.f32.s32 %v597
    %v601 = vcvt.f32.s32 %v599
    %v602 = vshll.u32 %v601, 16
    %v603 = vadd.s32 %v602, %v600
    %vm604 = vcmp.ge.s32.totalorder %v590, %v228
    %vm605 = vcmp.ge.s32.totalorder %v603, %v230
    %v606 = vsel %vm604, %v572, %v564
    %v607 = vsel %vm605, %v573, %v565
    %v608 = vsel %vm604, %v566, %v572
    %v609 = vsel %vm605, %v567, %v573
    %v610 = vsub.s32 %v608, %v606
    %v611 = vsub.s32 %v609, %v607
    %v612 = vshra.s32 %v610, 1
    %v613 = vshra.s32 %v611, 1
    %v614 = vadd.s32 %v606, %v612
    %v615 = vadd.s32 %v607, %v613
    %vm616 = vcmp.ge.s32.totalorder %v236, %v614
    %vm617 = vcmp.ge.s32.totalorder %v237, %v615
    %v618 = vsel %vm616, 1, 0
    %v619 = vsel %vm617, 1, 0
    %v620 = vsel %vm194, %v618, 0
    %v621 = vand.u32 %v620, 65535
    %v622 = vshrl.u32 %v620, 16
    %v623 = vcvt.s32.f32 %v621
    %v624 = vcvt.s32.f32 %v622
    %625 = vadd.xlane.f32.xlu0 %v623
    %v626 = vpop.xlane.xlu0 %625
    %627 = vadd.xlane.f32.xlu0 %v624
    %v628 = vpop.xlane.xlu0 %627
    %v629 = vcvt.f32.s32 %v626
    %v630 = vcvt.f32.s32 %v628
    %v631 = vshll.u32 %v630, 16
    %v632 = vadd.s32 %v631, %v629
    %v633 = vsel %vm194, %v619, 0
    %v634 = vand.u32 %v633, 65535
    %v635 = vshrl.u32 %v633, 16
    %v636 = vcvt.s32.f32 %v634
    %v637 = vcvt.s32.f32 %v635
    %638 = vadd.xlane.f32.xlu0 %v636
    %v639 = vpop.xlane.xlu0 %638
    %640 = vadd.xlane.f32.xlu0 %v637
    %v641 = vpop.xlane.xlu0 %640
    %v642 = vcvt.f32.s32 %v639
    %v643 = vcvt.f32.s32 %v641
    %v644 = vshll.u32 %v643, 16
    %v645 = vadd.s32 %v644, %v642
    %vm646 = vcmp.ge.s32.totalorder %v632, %v228
    %vm647 = vcmp.ge.s32.totalorder %v645, %v230
    %v648 = vsel %vm646, %v614, %v606
    %v649 = vsel %vm647, %v615, %v607
    %v650 = vsel %vm646, %v608, %v614
    %v651 = vsel %vm647, %v609, %v615
    %v652 = vsub.s32 %v650, %v648
    %v653 = vsub.s32 %v651, %v649
    %v654 = vshra.s32 %v652, 1
    %v655 = vshra.s32 %v653, 1
    %v656 = vadd.s32 %v648, %v654
    %v657 = vadd.s32 %v649, %v655
    %vm658 = vcmp.ge.s32.totalorder %v236, %v656
    %vm659 = vcmp.ge.s32.totalorder %v237, %v657
    %v660 = vsel %vm658, 1, 0
    %v661 = vsel %vm659, 1, 0
    %v662 = vsel %vm194, %v660, 0
    %v663 = vand.u32 %v662, 65535
    %v664 = vshrl.u32 %v662, 16
    %v665 = vcvt.s32.f32 %v663
    %v666 = vcvt.s32.f32 %v664
    %667 = vadd.xlane.f32.xlu0 %v665
    %v668 = vpop.xlane.xlu0 %667
    %669 = vadd.xlane.f32.xlu0 %v666
    %v670 = vpop.xlane.xlu0 %669
    %v671 = vcvt.f32.s32 %v668
    %v672 = vcvt.f32.s32 %v670
    %v673 = vshll.u32 %v672, 16
    %v674 = vadd.s32 %v673, %v671
    %v675 = vsel %vm194, %v661, 0
    %v676 = vand.u32 %v675, 65535
    %v677 = vshrl.u32 %v675, 16
    %v678 = vcvt.s32.f32 %v676
    %v679 = vcvt.s32.f32 %v677
    %680 = vadd.xlane.f32.xlu0 %v678
    %v681 = vpop.xlane.xlu0 %680
    %682 = vadd.xlane.f32.xlu0 %v679
    %v683 = vpop.xlane.xlu0 %682
    %v684 = vcvt.f32.s32 %v681
    %v685 = vcvt.f32.s32 %v683
    %v686 = vshll.u32 %v685, 16
    %v687 = vadd.s32 %v686, %v684
    %vm688 = vcmp.ge.s32.totalorder %v674, %v228
    %vm689 = vcmp.ge.s32.totalorder %v687, %v230
    %v690 = vsel %vm688, %v656, %v648
    %v691 = vsel %vm689, %v657, %v649
    %v692 = vsel %vm688, %v650, %v656
    %v693 = vsel %vm689, %v651, %v657
    %v694 = vsub.s32 %v692, %v690
    %v695 = vsub.s32 %v693, %v691
    %v696 = vshra.s32 %v694, 1
    %v697 = vshra.s32 %v695, 1
    %v698 = vadd.s32 %v690, %v696
    %v699 = vadd.s32 %v691, %v697
    %vm700 = vcmp.ge.s32.totalorder %v236, %v698
    %vm701 = vcmp.ge.s32.totalorder %v237, %v699
    %v702 = vsel %vm700, 1, 0
    %v703 = vsel %vm701, 1, 0
    %v704 = vsel %vm194, %v702, 0
    %v705 = vand.u32 %v704, 65535
    %v706 = vshrl.u32 %v704, 16
    %v707 = vcvt.s32.f32 %v705
    %v708 = vcvt.s32.f32 %v706
    %709 = vadd.xlane.f32.xlu0 %v707
    %v710 = vpop.xlane.xlu0 %709
    %711 = vadd.xlane.f32.xlu0 %v708
    %v712 = vpop.xlane.xlu0 %711
    %v713 = vcvt.f32.s32 %v710
    %v714 = vcvt.f32.s32 %v712
    %v715 = vshll.u32 %v714, 16
    %v716 = vadd.s32 %v715, %v713
    %v717 = vsel %vm194, %v703, 0
    %v718 = vand.u32 %v717, 65535
    %v719 = vshrl.u32 %v717, 16
    %v720 = vcvt.s32.f32 %v718
    %v721 = vcvt.s32.f32 %v719
    %722 = vadd.xlane.f32.xlu0 %v720
    %v723 = vpop.xlane.xlu0 %722
    %724 = vadd.xlane.f32.xlu0 %v721
    %v725 = vpop.xlane.xlu0 %724
    %v726 = vcvt.f32.s32 %v723
    %v727 = vcvt.f32.s32 %v725
    %v728 = vshll.u32 %v727, 16
    %v729 = vadd.s32 %v728, %v726
    %vm730 = vcmp.ge.s32.totalorder %v716, %v228
    %vm731 = vcmp.ge.s32.totalorder %v729, %v230
    %v732 = vsel %vm730, %v698, %v690
    %v733 = vsel %vm731, %v699, %v691
    %v734 = vsel %vm730, %v692, %v698
    %v735 = vsel %vm731, %v693, %v699
    %v736 = vsub.s32 %v734, %v732
    %v737 = vsub.s32 %v735, %v733
    %v738 = vshra.s32 %v736, 1
    %v739 = vshra.s32 %v737, 1
    %v740 = vadd.s32 %v732, %v738
    %v741 = vadd.s32 %v733, %v739
    %vm742 = vcmp.ge.s32.totalorder %v236, %v740
    %vm743 = vcmp.ge.s32.totalorder %v237, %v741
    %v744 = vsel %vm742, 1, 0
    %v745 = vsel %vm743, 1, 0
    %v746 = vsel %vm194, %v744, 0
    %v747 = vand.u32 %v746, 65535
    %v748 = vshrl.u32 %v746, 16
    %v749 = vcvt.s32.f32 %v747
    %v750 = vcvt.s32.f32 %v748
    %751 = vadd.xlane.f32.xlu0 %v749
    %v752 = vpop.xlane.xlu0 %751
    %753 = vadd.xlane.f32.xlu0 %v750
    %v754 = vpop.xlane.xlu0 %753
    %v755 = vcvt.f32.s32 %v752
    %v756 = vcvt.f32.s32 %v754
    %v757 = vshll.u32 %v756, 16
    %v758 = vadd.s32 %v757, %v755
    %v759 = vsel %vm194, %v745, 0
    %v760 = vand.u32 %v759, 65535
    %v761 = vshrl.u32 %v759, 16
    %v762 = vcvt.s32.f32 %v760
    %v763 = vcvt.s32.f32 %v761
    %764 = vadd.xlane.f32.xlu0 %v762
    %v765 = vpop.xlane.xlu0 %764
    %766 = vadd.xlane.f32.xlu0 %v763
    %v767 = vpop.xlane.xlu0 %766
    %v768 = vcvt.f32.s32 %v765
    %v769 = vcvt.f32.s32 %v767
    %v770 = vshll.u32 %v769, 16
    %v771 = vadd.s32 %v770, %v768
    %vm772 = vcmp.ge.s32.totalorder %v758, %v228
    %vm773 = vcmp.ge.s32.totalorder %v771, %v230
    %v774 = vsel %vm772, %v740, %v732
    %v775 = vsel %vm773, %v741, %v733
    %v776 = vsel %vm772, %v734, %v740
    %v777 = vsel %vm773, %v735, %v741
    %v778 = vsub.s32 %v776, %v774
    %v779 = vsub.s32 %v777, %v775
    %v780 = vshra.s32 %v778, 1
    %v781 = vshra.s32 %v779, 1
    %v782 = vadd.s32 %v774, %v780
    %v783 = vadd.s32 %v775, %v781
    %vm784 = vcmp.ge.s32.totalorder %v236, %v782
    %vm785 = vcmp.ge.s32.totalorder %v237, %v783
    %v786 = vsel %vm784, 1, 0
    %v787 = vsel %vm785, 1, 0
    %v788 = vsel %vm194, %v786, 0
    %v789 = vand.u32 %v788, 65535
    %v790 = vshrl.u32 %v788, 16
    %v791 = vcvt.s32.f32 %v789
    %v792 = vcvt.s32.f32 %v790
    %793 = vadd.xlane.f32.xlu0 %v791
    %v794 = vpop.xlane.xlu0 %793
    %795 = vadd.xlane.f32.xlu0 %v792
    %v796 = vpop.xlane.xlu0 %795
    %v797 = vcvt.f32.s32 %v794
    %v798 = vcvt.f32.s32 %v796
    %v799 = vshll.u32 %v798, 16
    %v800 = vadd.s32 %v799, %v797
    %v801 = vsel %vm194, %v787, 0
    %v802 = vand.u32 %v801, 65535
    %v803 = vshrl.u32 %v801, 16
    %v804 = vcvt.s32.f32 %v802
    %v805 = vcvt.s32.f32 %v803
    %806 = vadd.xlane.f32.xlu0 %v804
    %v807 = vpop.xlane.xlu0 %806
    %808 = vadd.xlane.f32.xlu0 %v805
    %v809 = vpop.xlane.xlu0 %808
    %v810 = vcvt.f32.s32 %v807
    %v811 = vcvt.f32.s32 %v809
    %v812 = vshll.u32 %v811, 16
    %v813 = vadd.s32 %v812, %v810
    %vm814 = vcmp.ge.s32.totalorder %v800, %v228
    %vm815 = vcmp.ge.s32.totalorder %v813, %v230
    %v816 = vsel %vm814, %v782, %v774
    %v817 = vsel %vm815, %v783, %v775
    %v818 = vsel %vm814, %v776, %v782
    %v819 = vsel %vm815, %v777, %v783
    %v820 = vsub.s32 %v818, %v816
    %v821 = vsub.s32 %v819, %v817
    %v822 = vshra.s32 %v820, 1
    %v823 = vshra.s32 %v821, 1
    %v824 = vadd.s32 %v816, %v822
    %v825 = vadd.s32 %v817, %v823
    %vm826 = vcmp.ge.s32.totalorder %v236, %v824
    %vm827 = vcmp.ge.s32.totalorder %v237, %v825
    %v828 = vsel %vm826, 1, 0
    %v829 = vsel %vm827, 1, 0
    %v830 = vsel %vm194, %v828, 0
    %v831 = vand.u32 %v830, 65535
    %v832 = vshrl.u32 %v830, 16
    %v833 = vcvt.s32.f32 %v831
    %v834 = vcvt.s32.f32 %v832
    %835 = vadd.xlane.f32.xlu0 %v833
    %v836 = vpop.xlane.xlu0 %835
    %837 = vadd.xlane.f32.xlu0 %v834
    %v838 = vpop.xlane.xlu0 %837
    %v839 = vcvt.f32.s32 %v836
    %v840 = vcvt.f32.s32 %v838
    %v841 = vshll.u32 %v840, 16
    %v842 = vadd.s32 %v841, %v839
    %v843 = vsel %vm194, %v829, 0
    %v844 = vand.u32 %v843, 65535
    %v845 = vshrl.u32 %v843, 16
    %v846 = vcvt.s32.f32 %v844
    %v847 = vcvt.s32.f32 %v845
    %848 = vadd.xlane.f32.xlu0 %v846
    %v849 = vpop.xlane.xlu0 %848
    %850 = vadd.xlane.f32.xlu0 %v847
    %v851 = vpop.xlane.xlu0 %850
    %v852 = vcvt.f32.s32 %v849
    %v853 = vcvt.f32.s32 %v851
    %v854 = vshll.u32 %v853, 16
    %v855 = vadd.s32 %v854, %v852
    %vm856 = vcmp.ge.s32.totalorder %v842, %v228
    %vm857 = vcmp.ge.s32.totalorder %v855, %v230
    %v858 = vsel %vm856, %v824, %v816
    %v859 = vsel %vm857, %v825, %v817
    %v860 = vsel %vm856, %v818, %v824
    %v861 = vsel %vm857, %v819, %v825
    %v862 = vsub.s32 %v860, %v858
    %v863 = vsub.s32 %v861, %v859
    %v864 = vshra.s32 %v862, 1
    %v865 = vshra.s32 %v863, 1
    %v866 = vadd.s32 %v858, %v864
    %v867 = vadd.s32 %v859, %v865
    %vm868 = vcmp.ge.s32.totalorder %v236, %v866
    %vm869 = vcmp.ge.s32.totalorder %v237, %v867
    %v870 = vsel %vm868, 1, 0
    %v871 = vsel %vm869, 1, 0
    %v872 = vsel %vm194, %v870, 0
    %v873 = vand.u32 %v872, 65535
    %v874 = vshrl.u32 %v872, 16
    %v875 = vcvt.s32.f32 %v873
    %v876 = vcvt.s32.f32 %v874
    %877 = vadd.xlane.f32.xlu0 %v875
    %v878 = vpop.xlane.xlu0 %877
    %879 = vadd.xlane.f32.xlu0 %v876
    %v880 = vpop.xlane.xlu0 %879
    %v881 = vcvt.f32.s32 %v878
    %v882 = vcvt.f32.s32 %v880
    %v883 = vshll.u32 %v882, 16
    %v884 = vadd.s32 %v883, %v881
    %v885 = vsel %vm194, %v871, 0
    %v886 = vand.u32 %v885, 65535
    %v887 = vshrl.u32 %v885, 16
    %v888 = vcvt.s32.f32 %v886
    %v889 = vcvt.s32.f32 %v887
    %890 = vadd.xlane.f32.xlu0 %v888
    %v891 = vpop.xlane.xlu0 %890
    %892 = vadd.xlane.f32.xlu0 %v889
    %v893 = vpop.xlane.xlu0 %892
    %v894 = vcvt.f32.s32 %v891
    %v895 = vcvt.f32.s32 %v893
    %v896 = vshll.u32 %v895, 16
    %v897 = vadd.s32 %v896, %v894
    %vm898 = vcmp.ge.s32.totalorder %v884, %v228
    %vm899 = vcmp.ge.s32.totalorder %v897, %v230
    %v900 = vsel %vm898, %v866, %v858
    %v901 = vsel %vm899, %v867, %v859
    %v902 = vsel %vm898, %v860, %v866
    %v903 = vsel %vm899, %v861, %v867
    %v904 = vsub.s32 %v902, %v900
    %v905 = vsub.s32 %v903, %v901
    %v906 = vshra.s32 %v904, 1
    %v907 = vshra.s32 %v905, 1
    %v908 = vadd.s32 %v900, %v906
    %v909 = vadd.s32 %v901, %v907
    %vm910 = vcmp.ge.s32.totalorder %v236, %v908
    %vm911 = vcmp.ge.s32.totalorder %v237, %v909
    %v912 = vsel %vm910, 1, 0
    %v913 = vsel %vm911, 1, 0
    %v914 = vsel %vm194, %v912, 0
    %v915 = vand.u32 %v914, 65535
    %v916 = vshrl.u32 %v914, 16
    %v917 = vcvt.s32.f32 %v915
    %v918 = vcvt.s32.f32 %v916
    %919 = vadd.xlane.f32.xlu0 %v917
    %v920 = vpop.xlane.xlu0 %919
    %921 = vadd.xlane.f32.xlu0 %v918
    %v922 = vpop.xlane.xlu0 %921
    %v923 = vcvt.f32.s32 %v920
    %v924 = vcvt.f32.s32 %v922
    %v925 = vshll.u32 %v924, 16
    %v926 = vadd.s32 %v925, %v923
    %v927 = vsel %vm194, %v913, 0
    %v928 = vand.u32 %v927, 65535
    %v929 = vshrl.u32 %v927, 16
    %v930 = vcvt.s32.f32 %v928
    %v931 = vcvt.s32.f32 %v929
    %932 = vadd.xlane.f32.xlu0 %v930
    %v933 = vpop.xlane.xlu0 %932
    %934 = vadd.xlane.f32.xlu0 %v931
    %v935 = vpop.xlane.xlu0 %934
    %v936 = vcvt.f32.s32 %v933
    %v937 = vcvt.f32.s32 %v935
    %v938 = vshll.u32 %v937, 16
    %v939 = vadd.s32 %v938, %v936
    %vm940 = vcmp.ge.s32.totalorder %v926, %v228
    %vm941 = vcmp.ge.s32.totalorder %v939, %v230
    %v942 = vsel %vm940, %v908, %v900
    %v943 = vsel %vm941, %v909, %v901
    %v944 = vsel %vm940, %v902, %v908
    %v945 = vsel %vm941, %v903, %v909
    %v946 = vsub.s32 %v944, %v942
    %v947 = vsub.s32 %v945, %v943
    %v948 = vshra.s32 %v946, 1
    %v949 = vshra.s32 %v947, 1
    %v950 = vadd.s32 %v942, %v948
    %v951 = vadd.s32 %v943, %v949
    %vm952 = vcmp.ge.s32.totalorder %v236, %v950
    %vm953 = vcmp.ge.s32.totalorder %v237, %v951
    %v954 = vsel %vm952, 1, 0
    %v955 = vsel %vm953, 1, 0
    %v956 = vsel %vm194, %v954, 0
    %v957 = vand.u32 %v956, 65535
    %v958 = vshrl.u32 %v956, 16
    %v959 = vcvt.s32.f32 %v957
    %v960 = vcvt.s32.f32 %v958
    %961 = vadd.xlane.f32.xlu0 %v959
    %v962 = vpop.xlane.xlu0 %961
    %963 = vadd.xlane.f32.xlu0 %v960
    %v964 = vpop.xlane.xlu0 %963
    %v965 = vcvt.f32.s32 %v962
    %v966 = vcvt.f32.s32 %v964
    %v967 = vshll.u32 %v966, 16
    %v968 = vadd.s32 %v967, %v965
    %v969 = vsel %vm194, %v955, 0
    %v970 = vand.u32 %v969, 65535
    %v971 = vshrl.u32 %v969, 16
    %v972 = vcvt.s32.f32 %v970
    %v973 = vcvt.s32.f32 %v971
    %974 = vadd.xlane.f32.xlu0 %v972
    %v975 = vpop.xlane.xlu0 %974
    %976 = vadd.xlane.f32.xlu0 %v973
    %v977 = vpop.xlane.xlu0 %976
    %v978 = vcvt.f32.s32 %v975
    %v979 = vcvt.f32.s32 %v977
    %v980 = vshll.u32 %v979, 16
    %v981 = vadd.s32 %v980, %v978
    %vm982 = vcmp.ge.s32.totalorder %v968, %v228
    %vm983 = vcmp.ge.s32.totalorder %v981, %v230
    %v984 = vsel %vm982, %v950, %v942
    %v985 = vsel %vm983, %v951, %v943
    %v986 = vsel %vm982, %v944, %v950
    %v987 = vsel %vm983, %v945, %v951
    %v988 = vsub.s32 %v986, %v984
    %v989 = vsub.s32 %v987, %v985
    %v990 = vshra.s32 %v988, 1
    %v991 = vshra.s32 %v989, 1
    %v992 = vadd.s32 %v984, %v990
    %v993 = vadd.s32 %v985, %v991
    %vm994 = vcmp.ge.s32.totalorder %v236, %v992
    %vm995 = vcmp.ge.s32.totalorder %v237, %v993
    %v996 = vsel %vm994, 1, 0
    %v997 = vsel %vm995, 1, 0
    %v998 = vsel %vm194, %v996, 0
    %v999 = vand.u32 %v998, 65535
    %v1000 = vshrl.u32 %v998, 16
    %v1001 = vcvt.s32.f32 %v999
    %v1002 = vcvt.s32.f32 %v1000
    %1003 = vadd.xlane.f32.xlu0 %v1001
    %v1004 = vpop.xlane.xlu0 %1003
    %1005 = vadd.xlane.f32.xlu0 %v1002
    %v1006 = vpop.xlane.xlu0 %1005
    %v1007 = vcvt.f32.s32 %v1004
    %v1008 = vcvt.f32.s32 %v1006
    %v1009 = vshll.u32 %v1008, 16
    %v1010 = vadd.s32 %v1009, %v1007
    %v1011 = vsel %vm194, %v997, 0
    %v1012 = vand.u32 %v1011, 65535
    %v1013 = vshrl.u32 %v1011, 16
    %v1014 = vcvt.s32.f32 %v1012
    %v1015 = vcvt.s32.f32 %v1013
    %1016 = vadd.xlane.f32.xlu0 %v1014
    %v1017 = vpop.xlane.xlu0 %1016
    %1018 = vadd.xlane.f32.xlu0 %v1015
    %v1019 = vpop.xlane.xlu0 %1018
    %v1020 = vcvt.f32.s32 %v1017
    %v1021 = vcvt.f32.s32 %v1019
    %v1022 = vshll.u32 %v1021, 16
    %v1023 = vadd.s32 %v1022, %v1020
    %vm1024 = vcmp.ge.s32.totalorder %v1010, %v228
    %vm1025 = vcmp.ge.s32.totalorder %v1023, %v230
    %v1026 = vsel %vm1024, %v992, %v984
    %v1027 = vsel %vm1025, %v993, %v985
    %v1028 = vsel %vm1024, %v986, %v992
    %v1029 = vsel %vm1025, %v987, %v993
    %v1030 = vsub.s32 %v1028, %v1026
    %v1031 = vsub.s32 %v1029, %v1027
    %v1032 = vshra.s32 %v1030, 1
    %v1033 = vshra.s32 %v1031, 1
    %v1034 = vadd.s32 %v1026, %v1032
    %v1035 = vadd.s32 %v1027, %v1033
    %vm1036 = vcmp.ge.s32.totalorder %v236, %v1034
    %vm1037 = vcmp.ge.s32.totalorder %v237, %v1035
    %v1038 = vsel %vm1036, 1, 0
    %v1039 = vsel %vm1037, 1, 0
    %v1040 = vsel %vm194, %v1038, 0
    %v1041 = vand.u32 %v1040, 65535
    %v1042 = vshrl.u32 %v1040, 16
    %v1043 = vcvt.s32.f32 %v1041
    %v1044 = vcvt.s32.f32 %v1042
    %1045 = vadd.xlane.f32.xlu0 %v1043
    %v1046 = vpop.xlane.xlu0 %1045
    %1047 = vadd.xlane.f32.xlu0 %v1044
    %v1048 = vpop.xlane.xlu0 %1047
    %v1049 = vcvt.f32.s32 %v1046
    %v1050 = vcvt.f32.s32 %v1048
    %v1051 = vshll.u32 %v1050, 16
    %v1052 = vadd.s32 %v1051, %v1049
    %v1053 = vsel %vm194, %v1039, 0
    %v1054 = vand.u32 %v1053, 65535
    %v1055 = vshrl.u32 %v1053, 16
    %v1056 = vcvt.s32.f32 %v1054
    %v1057 = vcvt.s32.f32 %v1055
    %1058 = vadd.xlane.f32.xlu0 %v1056
    %v1059 = vpop.xlane.xlu0 %1058
    %1060 = vadd.xlane.f32.xlu0 %v1057
    %v1061 = vpop.xlane.xlu0 %1060
    %v1062 = vcvt.f32.s32 %v1059
    %v1063 = vcvt.f32.s32 %v1061
    %v1064 = vshll.u32 %v1063, 16
    %v1065 = vadd.s32 %v1064, %v1062
    %vm1066 = vcmp.ge.s32.totalorder %v1052, %v228
    %vm1067 = vcmp.ge.s32.totalorder %v1065, %v230
    %v1068 = vsel %vm1066, %v1034, %v1026
    %v1069 = vsel %vm1067, %v1035, %v1027
    %v1070 = vsel %vm1066, %v1028, %v1034
    %v1071 = vsel %vm1067, %v1029, %v1035
    %v1072 = vsub.s32 %v1070, %v1068
    %v1073 = vsub.s32 %v1071, %v1069
    %v1074 = vshra.s32 %v1072, 1
    %v1075 = vshra.s32 %v1073, 1
    %v1076 = vadd.s32 %v1068, %v1074
    %v1077 = vadd.s32 %v1069, %v1075
    %vm1078 = vcmp.ge.s32.totalorder %v236, %v1076
    %vm1079 = vcmp.ge.s32.totalorder %v237, %v1077
    %v1080 = vsel %vm1078, 1, 0
    %v1081 = vsel %vm1079, 1, 0
    %v1082 = vsel %vm194, %v1080, 0
    %v1083 = vand.u32 %v1082, 65535
    %v1084 = vshrl.u32 %v1082, 16
    %v1085 = vcvt.s32.f32 %v1083
    %v1086 = vcvt.s32.f32 %v1084
    %1087 = vadd.xlane.f32.xlu0 %v1085
    %v1088 = vpop.xlane.xlu0 %1087
    %1089 = vadd.xlane.f32.xlu0 %v1086
    %v1090 = vpop.xlane.xlu0 %1089
    %v1091 = vcvt.f32.s32 %v1088
    %v1092 = vcvt.f32.s32 %v1090
    %v1093 = vshll.u32 %v1092, 16
    %v1094 = vadd.s32 %v1093, %v1091
    %v1095 = vsel %vm194, %v1081, 0
    %v1096 = vand.u32 %v1095, 65535
    %v1097 = vshrl.u32 %v1095, 16
    %v1098 = vcvt.s32.f32 %v1096
    %v1099 = vcvt.s32.f32 %v1097
    %1100 = vadd.xlane.f32.xlu0 %v1098
    %v1101 = vpop.xlane.xlu0 %1100
    %1102 = vadd.xlane.f32.xlu0 %v1099
    %v1103 = vpop.xlane.xlu0 %1102
    %v1104 = vcvt.f32.s32 %v1101
    %v1105 = vcvt.f32.s32 %v1103
    %v1106 = vshll.u32 %v1105, 16
    %v1107 = vadd.s32 %v1106, %v1104
    %vm1108 = vcmp.ge.s32.totalorder %v1094, %v228
    %vm1109 = vcmp.ge.s32.totalorder %v1107, %v230
    %v1110 = vsel %vm1108, %v1076, %v1068
    %v1111 = vsel %vm1109, %v1077, %v1069
    %v1112 = vsel %vm1108, %v1070, %v1076
    %v1113 = vsel %vm1109, %v1071, %v1077
    %v1114 = vsub.s32 %v1112, %v1110
    %v1115 = vsub.s32 %v1113, %v1111
    %v1116 = vshra.s32 %v1114, 1
    %v1117 = vshra.s32 %v1115, 1
    %v1118 = vadd.s32 %v1110, %v1116
    %v1119 = vadd.s32 %v1111, %v1117
    %vm1120 = vcmp.ge.s32.totalorder %v236, %v1118
    %vm1121 = vcmp.ge.s32.totalorder %v237, %v1119
    %v1122 = vsel %vm1120, 1, 0
    %v1123 = vsel %vm1121, 1, 0
    %v1124 = vsel %vm194, %v1122, 0
    %v1125 = vand.u32 %v1124, 65535
    %v1126 = vshrl.u32 %v1124, 16
    %v1127 = vcvt.s32.f32 %v1125
    %v1128 = vcvt.s32.f32 %v1126
    %1129 = vadd.xlane.f32.xlu0 %v1127
    %v1130 = vpop.xlane.xlu0 %1129
    %1131 = vadd.xlane.f32.xlu0 %v1128
    %v1132 = vpop.xlane.xlu0 %1131
    %v1133 = vcvt.f32.s32 %v1130
    %v1134 = vcvt.f32.s32 %v1132
    %v1135 = vshll.u32 %v1134, 16
    %v1136 = vadd.s32 %v1135, %v1133
    %v1137 = vsel %vm194, %v1123, 0
    %v1138 = vand.u32 %v1137, 65535
    %v1139 = vshrl.u32 %v1137, 16
    %v1140 = vcvt.s32.f32 %v1138
    %v1141 = vcvt.s32.f32 %v1139
    %1142 = vadd.xlane.f32.xlu0 %v1140
    %v1143 = vpop.xlane.xlu0 %1142
    %1144 = vadd.xlane.f32.xlu0 %v1141
    %v1145 = vpop.xlane.xlu0 %1144
    %v1146 = vcvt.f32.s32 %v1143
    %v1147 = vcvt.f32.s32 %v1145
    %v1148 = vshll.u32 %v1147, 16
    %v1149 = vadd.s32 %v1148, %v1146
    %vm1150 = vcmp.ge.s32.totalorder %v1136, %v228
    %vm1151 = vcmp.ge.s32.totalorder %v1149, %v230
    %v1152 = vsel %vm1150, %v1118, %v1110
    %v1153 = vsel %vm1151, %v1119, %v1111
    %v1154 = vsel %vm1150, %v1112, %v1118
    %v1155 = vsel %vm1151, %v1113, %v1119
    %v1156 = vsub.s32 %v1154, %v1152
    %v1157 = vsub.s32 %v1155, %v1153
    %v1158 = vshra.s32 %v1156, 1
    %v1159 = vshra.s32 %v1157, 1
    %v1160 = vadd.s32 %v1152, %v1158
    %v1161 = vadd.s32 %v1153, %v1159
    %vm1162 = vcmp.ge.s32.totalorder %v236, %v1160
    %vm1163 = vcmp.ge.s32.totalorder %v237, %v1161
    %v1164 = vsel %vm1162, 1, 0
    %v1165 = vsel %vm1163, 1, 0
    %v1166 = vsel %vm194, %v1164, 0
    %v1167 = vand.u32 %v1166, 65535
    %v1168 = vshrl.u32 %v1166, 16
    %v1169 = vcvt.s32.f32 %v1167
    %v1170 = vcvt.s32.f32 %v1168
    %1171 = vadd.xlane.f32.xlu0 %v1169
    %v1172 = vpop.xlane.xlu0 %1171
    %1173 = vadd.xlane.f32.xlu0 %v1170
    %v1174 = vpop.xlane.xlu0 %1173
    %v1175 = vcvt.f32.s32 %v1172
    %v1176 = vcvt.f32.s32 %v1174
    %v1177 = vshll.u32 %v1176, 16
    %v1178 = vadd.s32 %v1177, %v1175
    %v1179 = vsel %vm194, %v1165, 0
    %v1180 = vand.u32 %v1179, 65535
    %v1181 = vshrl.u32 %v1179, 16
    %v1182 = vcvt.s32.f32 %v1180
    %v1183 = vcvt.s32.f32 %v1181
    %1184 = vadd.xlane.f32.xlu0 %v1182
    %v1185 = vpop.xlane.xlu0 %1184
    %1186 = vadd.xlane.f32.xlu0 %v1183
    %v1187 = vpop.xlane.xlu0 %1186
    %v1188 = vcvt.f32.s32 %v1185
    %v1189 = vcvt.f32.s32 %v1187
    %v1190 = vshll.u32 %v1189, 16
    %v1191 = vadd.s32 %v1190, %v1188
    %vm1192 = vcmp.ge.s32.totalorder %v1178, %v228
    %vm1193 = vcmp.ge.s32.totalorder %v1191, %v230
    %v1194 = vsel %vm1192, %v1160, %v1152
    %v1195 = vsel %vm1193, %v1161, %v1153
    %v1196 = vsel %vm1192, %v1154, %v1160
    %v1197 = vsel %vm1193, %v1155, %v1161
    %v1198 = vsub.s32 %v1196, %v1194
    %v1199 = vsub.s32 %v1197, %v1195
    %v1200 = vshra.s32 %v1198, 1
    %v1201 = vshra.s32 %v1199, 1
    %v1202 = vadd.s32 %v1194, %v1200
    %v1203 = vadd.s32 %v1195, %v1201
    %vm1204 = vcmp.ge.s32.totalorder %v236, %v1202
    %vm1205 = vcmp.ge.s32.totalorder %v237, %v1203
    %v1206 = vsel %vm1204, 1, 0
    %v1207 = vsel %vm1205, 1, 0
    %v1208 = vsel %vm194, %v1206, 0
    %v1209 = vand.u32 %v1208, 65535
    %v1210 = vshrl.u32 %v1208, 16
    %v1211 = vcvt.s32.f32 %v1209
    %v1212 = vcvt.s32.f32 %v1210
    %1213 = vadd.xlane.f32.xlu0 %v1211
    %v1214 = vpop.xlane.xlu0 %1213
    %1215 = vadd.xlane.f32.xlu0 %v1212
    %v1216 = vpop.xlane.xlu0 %1215
    %v1217 = vcvt.f32.s32 %v1214
    %v1218 = vcvt.f32.s32 %v1216
    %v1219 = vshll.u32 %v1218, 16
    %v1220 = vadd.s32 %v1219, %v1217
    %v1221 = vsel %vm194, %v1207, 0
    %v1222 = vand.u32 %v1221, 65535
    %v1223 = vshrl.u32 %v1221, 16
    %v1224 = vcvt.s32.f32 %v1222
    %v1225 = vcvt.s32.f32 %v1223
    %1226 = vadd.xlane.f32.xlu0 %v1224
    %v1227 = vpop.xlane.xlu0 %1226
    %1228 = vadd.xlane.f32.xlu0 %v1225
    %v1229 = vpop.xlane.xlu0 %1228
    %v1230 = vcvt.f32.s32 %v1227
    %v1231 = vcvt.f32.s32 %v1229
    %v1232 = vshll.u32 %v1231, 16
    %v1233 = vadd.s32 %v1232, %v1230
    %vm1234 = vcmp.ge.s32.totalorder %v1220, %v228
    %vm1235 = vcmp.ge.s32.totalorder %v1233, %v230
    %v1236 = vsel %vm1234, %v1202, %v1194
    %v1237 = vsel %vm1235, %v1203, %v1195
    %v1238 = vsel %vm1234, %v1196, %v1202
    %v1239 = vsel %vm1235, %v1197, %v1203
    %v1240 = vsub.s32 %v1238, %v1236
    %v1241 = vsub.s32 %v1239, %v1237
    %v1242 = vshra.s32 %v1240, 1
    %v1243 = vshra.s32 %v1241, 1
    %v1244 = vadd.s32 %v1236, %v1242
    %v1245 = vadd.s32 %v1237, %v1243
    %vm1246 = vcmp.ge.s32.totalorder %v236, %v1244
    %vm1247 = vcmp.ge.s32.totalorder %v237, %v1245
    %v1248 = vsel %vm1246, 1, 0
    %v1249 = vsel %vm1247, 1, 0
    %v1250 = vsel %vm194, %v1248, 0
    %v1251 = vand.u32 %v1250, 65535
    %v1252 = vshrl.u32 %v1250, 16
    %v1253 = vcvt.s32.f32 %v1251
    %v1254 = vcvt.s32.f32 %v1252
    %1255 = vadd.xlane.f32.xlu0 %v1253
    %v1256 = vpop.xlane.xlu0 %1255
    %1257 = vadd.xlane.f32.xlu0 %v1254
    %v1258 = vpop.xlane.xlu0 %1257
    %v1259 = vcvt.f32.s32 %v1256
    %v1260 = vcvt.f32.s32 %v1258
    %v1261 = vshll.u32 %v1260, 16
    %v1262 = vadd.s32 %v1261, %v1259
    %v1263 = vsel %vm194, %v1249, 0
    %v1264 = vand.u32 %v1263, 65535
    %v1265 = vshrl.u32 %v1263, 16
    %v1266 = vcvt.s32.f32 %v1264
    %v1267 = vcvt.s32.f32 %v1265
    %1268 = vadd.xlane.f32.xlu0 %v1266
    %v1269 = vpop.xlane.xlu0 %1268
    %1270 = vadd.xlane.f32.xlu0 %v1267
    %v1271 = vpop.xlane.xlu0 %1270
    %v1272 = vcvt.f32.s32 %v1269
    %v1273 = vcvt.f32.s32 %v1271
    %v1274 = vshll.u32 %v1273, 16
    %v1275 = vadd.s32 %v1274, %v1272
    %vm1276 = vcmp.ge.s32.totalorder %v1262, %v228
    %vm1277 = vcmp.ge.s32.totalorder %v1275, %v230
    %v1278 = vsel %vm1276, %v1244, %v1236
    %v1279 = vsel %vm1277, %v1245, %v1237
    %v1280 = vsel %vm1276, %v1238, %v1244
    %v1281 = vsel %vm1277, %v1239, %v1245
    %v1282 = vsub.s32 %v1280, %v1278
    %v1283 = vsub.s32 %v1281, %v1279
    %v1284 = vshra.s32 %v1282, 1
    %v1285 = vshra.s32 %v1283, 1
    %v1286 = vadd.s32 %v1278, %v1284
    %v1287 = vadd.s32 %v1279, %v1285
    %vm1288 = vcmp.ge.s32.totalorder %v236, %v1286
    %vm1289 = vcmp.ge.s32.totalorder %v237, %v1287
    %v1290 = vsel %vm1288, 1, 0
    %v1291 = vsel %vm1289, 1, 0
    %v1292 = vsel %vm194, %v1290, 0
    %v1293 = vand.u32 %v1292, 65535
    %v1294 = vshrl.u32 %v1292, 16
    %v1295 = vcvt.s32.f32 %v1293
    %v1296 = vcvt.s32.f32 %v1294
    %1297 = vadd.xlane.f32.xlu0 %v1295
    %v1298 = vpop.xlane.xlu0 %1297
    %1299 = vadd.xlane.f32.xlu0 %v1296
    %v1300 = vpop.xlane.xlu0 %1299
    %v1301 = vcvt.f32.s32 %v1298
    %v1302 = vcvt.f32.s32 %v1300
    %v1303 = vshll.u32 %v1302, 16
    %v1304 = vadd.s32 %v1303, %v1301
    %v1305 = vsel %vm194, %v1291, 0
    %v1306 = vand.u32 %v1305, 65535
    %v1307 = vshrl.u32 %v1305, 16
    %v1308 = vcvt.s32.f32 %v1306
    %v1309 = vcvt.s32.f32 %v1307
    %1310 = vadd.xlane.f32.xlu0 %v1308
    %v1311 = vpop.xlane.xlu0 %1310
    %1312 = vadd.xlane.f32.xlu0 %v1309
    %v1313 = vpop.xlane.xlu0 %1312
    %v1314 = vcvt.f32.s32 %v1311
    %v1315 = vcvt.f32.s32 %v1313
    %v1316 = vshll.u32 %v1315, 16
    %v1317 = vadd.s32 %v1316, %v1314
    %vm1318 = vcmp.ge.s32.totalorder %v1304, %v228
    %vm1319 = vcmp.ge.s32.totalorder %v1317, %v230
    %v1320 = vsel %vm1318, %v1286, %v1278
    %v1321 = vsel %vm1319, %v1287, %v1279
    %v1322 = vsel %vm1318, %v1280, %v1286
    %v1323 = vsel %vm1319, %v1281, %v1287
    %v1324 = vsub.s32 %v1322, %v1320
    %v1325 = vsub.s32 %v1323, %v1321
    %v1326 = vshra.s32 %v1324, 1
    %v1327 = vshra.s32 %v1325, 1
    %v1328 = vadd.s32 %v1320, %v1326
    %v1329 = vadd.s32 %v1321, %v1327
    %vm1330 = vcmp.ge.s32.totalorder %v236, %v1328
    %vm1331 = vcmp.ge.s32.totalorder %v237, %v1329
    %v1332 = vsel %vm1330, 1, 0
    %v1333 = vsel %vm1331, 1, 0
    %v1334 = vsel %vm194, %v1332, 0
    %v1335 = vand.u32 %v1334, 65535
    %v1336 = vshrl.u32 %v1334, 16
    %v1337 = vcvt.s32.f32 %v1335
    %v1338 = vcvt.s32.f32 %v1336
    %1339 = vadd.xlane.f32.xlu0 %v1337
    %v1340 = vpop.xlane.xlu0 %1339
    %1341 = vadd.xlane.f32.xlu0 %v1338
    %v1342 = vpop.xlane.xlu0 %1341
    %v1343 = vcvt.f32.s32 %v1340
    %v1344 = vcvt.f32.s32 %v1342
    %v1345 = vshll.u32 %v1344, 16
    %v1346 = vadd.s32 %v1345, %v1343
    %v1347 = vsel %vm194, %v1333, 0
    %v1348 = vand.u32 %v1347, 65535
    %v1349 = vshrl.u32 %v1347, 16
    %v1350 = vcvt.s32.f32 %v1348
    %v1351 = vcvt.s32.f32 %v1349
    %1352 = vadd.xlane.f32.xlu0 %v1350
    %v1353 = vpop.xlane.xlu0 %1352
    %1354 = vadd.xlane.f32.xlu0 %v1351
    %v1355 = vpop.xlane.xlu0 %1354
    %v1356 = vcvt.f32.s32 %v1353
    %v1357 = vcvt.f32.s32 %v1355
    %v1358 = vshll.u32 %v1357, 16
    %v1359 = vadd.s32 %v1358, %v1356
    %vm1360 = vcmp.ge.s32.totalorder %v1346, %v228
    %vm1361 = vcmp.ge.s32.totalorder %v1359, %v230
    %v1362 = vsel %vm1360, %v1328, %v1320
    %v1363 = vsel %vm1361, %v1329, %v1321
    %v1364 = vsel %vm1360, %v1322, %v1328
    %v1365 = vsel %vm1361, %v1323, %v1329
    %v1366 = vsub.s32 %v1364, %v1362
    %v1367 = vsub.s32 %v1365, %v1363
    %v1368 = vshra.s32 %v1366, 1
    %v1369 = vshra.s32 %v1367, 1
    %v1370 = vadd.s32 %v1362, %v1368
    %v1371 = vadd.s32 %v1363, %v1369
    %vm1372 = vcmp.ge.s32.totalorder %v236, %v1370
    %vm1373 = vcmp.ge.s32.totalorder %v237, %v1371
    %v1374 = vsel %vm1372, 1, 0
    %v1375 = vsel %vm1373, 1, 0
    %v1376 = vsel %vm194, %v1374, 0
    %v1377 = vand.u32 %v1376, 65535
    %v1378 = vshrl.u32 %v1376, 16
    %v1379 = vcvt.s32.f32 %v1377
    %v1380 = vcvt.s32.f32 %v1378
    %1381 = vadd.xlane.f32.xlu0 %v1379
    %v1382 = vpop.xlane.xlu0 %1381
    %1383 = vadd.xlane.f32.xlu0 %v1380
    %v1384 = vpop.xlane.xlu0 %1383
    %v1385 = vcvt.f32.s32 %v1382
    %v1386 = vcvt.f32.s32 %v1384
    %v1387 = vshll.u32 %v1386, 16
    %v1388 = vadd.s32 %v1387, %v1385
    %v1389 = vsel %vm194, %v1375, 0
    %v1390 = vand.u32 %v1389, 65535
    %v1391 = vshrl.u32 %v1389, 16
    %v1392 = vcvt.s32.f32 %v1390
    %v1393 = vcvt.s32.f32 %v1391
    %1394 = vadd.xlane.f32.xlu0 %v1392
    %v1395 = vpop.xlane.xlu0 %1394
    %1396 = vadd.xlane.f32.xlu0 %v1393
    %v1397 = vpop.xlane.xlu0 %1396
    %v1398 = vcvt.f32.s32 %v1395
    %v1399 = vcvt.f32.s32 %v1397
    %v1400 = vshll.u32 %v1399, 16
    %v1401 = vadd.s32 %v1400, %v1398
    %vm1402 = vcmp.ge.s32.totalorder %v1388, %v228
    %vm1403 = vcmp.ge.s32.totalorder %v1401, %v230
    %v1404 = vsel %vm1402, %v1370, %v1362
    %v1405 = vsel %vm1403, %v1371, %v1363
    %v1406 = vsel %vm1402, %v1364, %v1370
    %v1407 = vsel %vm1403, %v1365, %v1371
    %v1408 = vsub.s32 %v1406, %v1404
    %v1409 = vsub.s32 %v1407, %v1405
    %v1410 = vshra.s32 %v1408, 1
    %v1411 = vshra.s32 %v1409, 1
    %v1412 = vadd.s32 %v1404, %v1410
    %v1413 = vadd.s32 %v1405, %v1411
    %vm1414 = vcmp.ge.s32.totalorder %v236, %v1412
    %vm1415 = vcmp.ge.s32.totalorder %v237, %v1413
    %v1416 = vsel %vm1414, 1, 0
    %v1417 = vsel %vm1415, 1, 0
    %v1418 = vsel %vm194, %v1416, 0
    %v1419 = vand.u32 %v1418, 65535
    %v1420 = vshrl.u32 %v1418, 16
    %v1421 = vcvt.s32.f32 %v1419
    %v1422 = vcvt.s32.f32 %v1420
    %1423 = vadd.xlane.f32.xlu0 %v1421
    %v1424 = vpop.xlane.xlu0 %1423
    %1425 = vadd.xlane.f32.xlu0 %v1422
    %v1426 = vpop.xlane.xlu0 %1425
    %v1427 = vcvt.f32.s32 %v1424
    %v1428 = vcvt.f32.s32 %v1426
    %v1429 = vshll.u32 %v1428, 16
    %v1430 = vadd.s32 %v1429, %v1427
    %v1431 = vsel %vm194, %v1417, 0
    %v1432 = vand.u32 %v1431, 65535
    %v1433 = vshrl.u32 %v1431, 16
    %v1434 = vcvt.s32.f32 %v1432
    %v1435 = vcvt.s32.f32 %v1433
    %1436 = vadd.xlane.f32.xlu0 %v1434
    %v1437 = vpop.xlane.xlu0 %1436
    %1438 = vadd.xlane.f32.xlu0 %v1435
    %v1439 = vpop.xlane.xlu0 %1438
    %v1440 = vcvt.f32.s32 %v1437
    %v1441 = vcvt.f32.s32 %v1439
    %v1442 = vshll.u32 %v1441, 16
    %v1443 = vadd.s32 %v1442, %v1440
    %vm1444 = vcmp.ge.s32.totalorder %v1430, %v228
    %vm1445 = vcmp.ge.s32.totalorder %v1443, %v230
    %v1446 = vsel %vm1444, %v1412, %v1404
    %v1447 = vsel %vm1445, %v1413, %v1405
    %v1448 = vsel %vm1444, %v1406, %v1412
    %v1449 = vsel %vm1445, %v1407, %v1413
    %v1450 = vsub.s32 %v1448, %v1446
    %v1451 = vsub.s32 %v1449, %v1447
    %v1452 = vshra.s32 %v1450, 1
    %v1453 = vshra.s32 %v1451, 1
    %v1454 = vadd.s32 %v1446, %v1452
    %v1455 = vadd.s32 %v1447, %v1453
    %vm1456 = vcmp.ge.s32.totalorder %v236, %v1454
    %vm1457 = vcmp.ge.s32.totalorder %v237, %v1455
    %v1458 = vsel %vm1456, 1, 0
    %v1459 = vsel %vm1457, 1, 0
    %v1460 = vsel %vm194, %v1458, 0
    %v1461 = vand.u32 %v1460, 65535
    %v1462 = vshrl.u32 %v1460, 16
    %v1463 = vcvt.s32.f32 %v1461
    %v1464 = vcvt.s32.f32 %v1462
    %1465 = vadd.xlane.f32.xlu0 %v1463
    %v1466 = vpop.xlane.xlu0 %1465
    %1467 = vadd.xlane.f32.xlu0 %v1464
    %v1468 = vpop.xlane.xlu0 %1467
    %v1469 = vcvt.f32.s32 %v1466
    %v1470 = vcvt.f32.s32 %v1468
    %v1471 = vshll.u32 %v1470, 16
    %v1472 = vadd.s32 %v1471, %v1469
    %v1473 = vsel %vm194, %v1459, 0
    %v1474 = vand.u32 %v1473, 65535
    %v1475 = vshrl.u32 %v1473, 16
    %v1476 = vcvt.s32.f32 %v1474
    %v1477 = vcvt.s32.f32 %v1475
    %1478 = vadd.xlane.f32.xlu0 %v1476
    %v1479 = vpop.xlane.xlu0 %1478
    %1480 = vadd.xlane.f32.xlu0 %v1477
    %v1481 = vpop.xlane.xlu0 %1480
    %v1482 = vcvt.f32.s32 %v1479
    %v1483 = vcvt.f32.s32 %v1481
    %v1484 = vshll.u32 %v1483, 16
    %v1485 = vadd.s32 %v1484, %v1482
    %vm1486 = vcmp.ge.s32.totalorder %v1472, %v228
    %vm1487 = vcmp.ge.s32.totalorder %v1485, %v230
    %v1488 = vsel %vm1486, %v1454, %v1446
    %v1489 = vsel %vm1487, %v1455, %v1447
    %v1490 = vsel %vm1486, %v1448, %v1454
    %v1491 = vsel %vm1487, %v1449, %v1455
    %v1492 = vsub.s32 %v1490, %v1488
    %v1493 = vsub.s32 %v1491, %v1489
    %v1494 = vshra.s32 %v1492, 1
    %v1495 = vshra.s32 %v1493, 1
    %v1496 = vadd.s32 %v1488, %v1494
    %v1497 = vadd.s32 %v1489, %v1495
    %vm1498 = vcmp.ge.s32.totalorder %v236, %v1496
    %vm1499 = vcmp.ge.s32.totalorder %v237, %v1497
    %v1500 = vsel %vm1498, 1, 0
    %v1501 = vsel %vm1499, 1, 0
    %v1502 = vsel %vm194, %v1500, 0
    %v1503 = vand.u32 %v1502, 65535
    %v1504 = vshrl.u32 %v1502, 16
    %v1505 = vcvt.s32.f32 %v1503
    %v1506 = vcvt.s32.f32 %v1504
    %1507 = vadd.xlane.f32.xlu0 %v1505
    %v1508 = vpop.xlane.xlu0 %1507
    %1509 = vadd.xlane.f32.xlu0 %v1506
    %v1510 = vpop.xlane.xlu0 %1509
    %v1511 = vcvt.f32.s32 %v1508
    %v1512 = vcvt.f32.s32 %v1510
    %v1513 = vshll.u32 %v1512, 16
    %v1514 = vadd.s32 %v1513, %v1511
    %v1515 = vsel %vm194, %v1501, 0
    %v1516 = vand.u32 %v1515, 65535
    %v1517 = vshrl.u32 %v1515, 16
    %v1518 = vcvt.s32.f32 %v1516
    %v1519 = vcvt.s32.f32 %v1517
    %1520 = vadd.xlane.f32.xlu0 %v1518
    %v1521 = vpop.xlane.xlu0 %1520
    %1522 = vadd.xlane.f32.xlu0 %v1519
    %v1523 = vpop.xlane.xlu0 %1522
    %v1524 = vcvt.f32.s32 %v1521
    %v1525 = vcvt.f32.s32 %v1523
    %v1526 = vshll.u32 %v1525, 16
    %v1527 = vadd.s32 %v1526, %v1524
    %vm1528 = vcmp.ge.s32.totalorder %v1514, %v228
    %vm1529 = vcmp.ge.s32.totalorder %v1527, %v230
    %v1530 = vsel %vm1528, %v1496, %v1488
    %v1531 = vsel %vm1529, %v1497, %v1489
    %vm1532 = vcmp.ge.s32.totalorder %v236, %v1530
    %vm1533 = vcmp.ge.s32.totalorder %v237, %v1531
    %vm1534 = vcmp.gt.s32.totalorder %v221, 0
    %vm1535 = vcmp.gt.s32.totalorder %v222, 0
    %v1536 = vsel %vm1534, 1, 0
    %v1537 = vsel %vm1535, 1, 0
    %vm1538 = vcmp.eq.s32.totalorder %v1536, 1
    %vm1539 = vcmp.eq.s32.totalorder %v1537, 1
    %vm1540 = vmand %vm1532, %vm1538
    %vm1541 = vmand %vm1533, %vm1539
    %vm1542 = vmor %vm190, %vm1540
    %vm1543 = vmor %vm191, %vm1541
    %v1544 = vsel %vm1542, %v181, 0.0
    %v1545 = vsel %vm1543, %v182, 0.0
    %v1546 = vsel %vm194, %v1544, 0.0
    %v1547 = vsel %vm194, %v1545, 0.0
    %v1548 = vadd.f32 %v1546, %v1547
    %1549 = vadd.xlane.f32.xlu0 %v1548
    %v1550 = vpop.xlane.xlu0 %1549
    %v1551 = vrot.slane %v1550, 4
    %v1552 = vadd.f32 %v1550, %v1551
    %v1553 = vrot.slane %v1552, 2
    %v1554 = vadd.f32 %v1552, %v1553
    %v1555 = vrot.slane %v1554, 1
    %v1556 = vadd.f32 %v1554, %v1555
    %s1557 = vtos %v1556
    %v1558 = vld [vmem:[%s3] sm:$0xff]
    %v1559 = vld [vmem:[%s3 + $0x8] sm:$0xff]
    %v1560 = vld [vmem:[%s3 + $0x10] sm:$0xff]
    %v1561 = vld [vmem:[%s3 + $0x18] sm:$0xff]
    %v1562 = vld [vmem:[%s3 + $0x20] sm:$0xff]
    %v1563 = vld [vmem:[%s3 + $0x28] sm:$0xff]
    %v1564 = vld [vmem:[%s3 + $0x30] sm:$0xff]
    %v1565 = vld [vmem:[%s3 + $0x38] sm:$0xff]
    %v1566 = vld [vmem:[%s3 + $0x40] sm:$0xff]
    %v1567 = vld [vmem:[%s3 + $0x48] sm:$0xff]
    %v1568 = vld [vmem:[%s3 + $0x50] sm:$0xff]
    %v1569 = vld [vmem:[%s3 + $0x58] sm:$0xff]
    %v1570 = vld [vmem:[%s3 + $0x60] sm:$0xff]
    %v1571 = vld [vmem:[%s3 + $0x68] sm:$0xff]
    %v1572 = vld [vmem:[%s3 + $0x70] sm:$0xff]
    %v1573 = vld [vmem:[%s3 + $0x78] sm:$0xff]
    %v1574 = vld [vmem:[%s3 + $0x80] sm:$0xff]
    %v1575 = vld [vmem:[%s3 + $0x88] sm:$0xff]
    %v1576 = vld [vmem:[%s3 + $0x90] sm:$0xff]
    %v1577 = vld [vmem:[%s3 + $0x98] sm:$0xff]
    %v1578 = vld [vmem:[%s3 + $0xa0] sm:$0xff]
    %v1579 = vld [vmem:[%s3 + $0xa8] sm:$0xff]
    %v1580 = vld [vmem:[%s3 + $0xb0] sm:$0xff]
    %v1581 = vld [vmem:[%s3 + $0xb8] sm:$0xff]
    %v1582 = vld [vmem:[%s3 + $0xc0] sm:$0xff]
    %v1583 = vld [vmem:[%s3 + $0xc8] sm:$0xff]
    %v1584 = vld [vmem:[%s3 + $0xd0] sm:$0xff]
    %v1585 = vld [vmem:[%s3 + $0xd8] sm:$0xff]
    %v1586 = vld [vmem:[%s3 + $0xe0] sm:$0xff]
    %v1587 = vld [vmem:[%s3 + $0xe8] sm:$0xff]
    %v1588 = vld [vmem:[%s3 + $0xf0] sm:$0xff]
    %v1589 = vld [vmem:[%s3 + $0xf8] sm:$0xff]
    %vm1590 = vcmp.gt.s32.totalorder %v1558, 0
    %vm1591 = vcmp.gt.s32.totalorder %v1559, 0
    %vm1592 = vcmp.gt.s32.totalorder %v1560, 0
    %vm1593 = vcmp.gt.s32.totalorder %v1561, 0
    %vm1594 = vcmp.gt.s32.totalorder %v1562, 0
    %vm1595 = vcmp.gt.s32.totalorder %v1563, 0
    %vm1596 = vcmp.gt.s32.totalorder %v1564, 0
    %vm1597 = vcmp.gt.s32.totalorder %v1565, 0
    %vm1598 = vcmp.gt.s32.totalorder %v1566, 0
    %vm1599 = vcmp.gt.s32.totalorder %v1567, 0
    %vm1600 = vcmp.gt.s32.totalorder %v1568, 0
    %vm1601 = vcmp.gt.s32.totalorder %v1569, 0
    %vm1602 = vcmp.gt.s32.totalorder %v1570, 0
    %vm1603 = vcmp.gt.s32.totalorder %v1571, 0
    %vm1604 = vcmp.gt.s32.totalorder %v1572, 0
    %vm1605 = vcmp.gt.s32.totalorder %v1573, 0
    %vm1606 = vcmp.gt.s32.totalorder %v1574, 0
    %vm1607 = vcmp.gt.s32.totalorder %v1575, 0
    %vm1608 = vcmp.gt.s32.totalorder %v1576, 0
    %vm1609 = vcmp.gt.s32.totalorder %v1577, 0
    %vm1610 = vcmp.gt.s32.totalorder %v1578, 0
    %vm1611 = vcmp.gt.s32.totalorder %v1579, 0
    %vm1612 = vcmp.gt.s32.totalorder %v1580, 0
    %vm1613 = vcmp.gt.s32.totalorder %v1581, 0
    %vm1614 = vcmp.gt.s32.totalorder %v1582, 0
    %vm1615 = vcmp.gt.s32.totalorder %v1583, 0
    %vm1616 = vcmp.gt.s32.totalorder %v1584, 0
    %vm1617 = vcmp.gt.s32.totalorder %v1585, 0
    %vm1618 = vcmp.gt.s32.totalorder %v1586, 0
    %vm1619 = vcmp.gt.s32.totalorder %v1587, 0
    %vm1620 = vcmp.gt.s32.totalorder %v1588, 0
    %vm1621 = vcmp.gt.s32.totalorder %v1589, 0
    %v1622 = vld [vmem:[%s1] sm:$0xff]
    %v1623 = vld [vmem:[%s1 + $0x8] sm:$0xff]
    %v1624 = vld [vmem:[%s1 + $0x10] sm:$0xff]
    %v1625 = vld [vmem:[%s1 + $0x18] sm:$0xff]
    %v1626 = vld [vmem:[%s1 + $0x20] sm:$0xff]
    %v1627 = vld [vmem:[%s1 + $0x28] sm:$0xff]
    %v1628 = vld [vmem:[%s1 + $0x30] sm:$0xff]
    %v1629 = vld [vmem:[%s1 + $0x38] sm:$0xff]
    %v1630 = vld [vmem:[%s1 + $0x40] sm:$0xff]
    %v1631 = vld [vmem:[%s1 + $0x48] sm:$0xff]
    %v1632 = vld [vmem:[%s1 + $0x50] sm:$0xff]
    %v1633 = vld [vmem:[%s1 + $0x58] sm:$0xff]
    %v1634 = vld [vmem:[%s1 + $0x60] sm:$0xff]
    %v1635 = vld [vmem:[%s1 + $0x68] sm:$0xff]
    %v1636 = vld [vmem:[%s1 + $0x70] sm:$0xff]
    %v1637 = vld [vmem:[%s1 + $0x78] sm:$0xff]
    %v1638 = vld [vmem:[%s1 + $0x80] sm:$0xff]
    %v1639 = vld [vmem:[%s1 + $0x88] sm:$0xff]
    %v1640 = vld [vmem:[%s1 + $0x90] sm:$0xff]
    %v1641 = vld [vmem:[%s1 + $0x98] sm:$0xff]
    %v1642 = vld [vmem:[%s1 + $0xa0] sm:$0xff]
    %v1643 = vld [vmem:[%s1 + $0xa8] sm:$0xff]
    %v1644 = vld [vmem:[%s1 + $0xb0] sm:$0xff]
    %v1645 = vld [vmem:[%s1 + $0xb8] sm:$0xff]
    %v1646 = vld [vmem:[%s1 + $0xc0] sm:$0xff]
    %v1647 = vld [vmem:[%s1 + $0xc8] sm:$0xff]
    %v1648 = vld [vmem:[%s1 + $0xd0] sm:$0xff]
    %v1649 = vld [vmem:[%s1 + $0xd8] sm:$0xff]
    %v1650 = vld [vmem:[%s1 + $0xe0] sm:$0xff]
    %v1651 = vld [vmem:[%s1 + $0xe8] sm:$0xff]
    %v1652 = vld [vmem:[%s1 + $0xf0] sm:$0xff]
    %v1653 = vld [vmem:[%s1 + $0xf8] sm:$0xff]
    %v1654 = vld [vmem:[%s2] sm:$0xff]
    %v1655 = vld [vmem:[%s2 + $0x8] sm:$0xff]
    %v1656 = vld [vmem:[%s2 + $0x10] sm:$0xff]
    %v1657 = vld [vmem:[%s2 + $0x18] sm:$0xff]
    %v1658 = vld [vmem:[%s2 + $0x20] sm:$0xff]
    %v1659 = vld [vmem:[%s2 + $0x28] sm:$0xff]
    %v1660 = vld [vmem:[%s2 + $0x30] sm:$0xff]
    %v1661 = vld [vmem:[%s2 + $0x38] sm:$0xff]
    %v1662 = vld [vmem:[%s2 + $0x40] sm:$0xff]
    %v1663 = vld [vmem:[%s2 + $0x48] sm:$0xff]
    %v1664 = vld [vmem:[%s2 + $0x50] sm:$0xff]
    %v1665 = vld [vmem:[%s2 + $0x58] sm:$0xff]
    %v1666 = vld [vmem:[%s2 + $0x60] sm:$0xff]
    %v1667 = vld [vmem:[%s2 + $0x68] sm:$0xff]
    %v1668 = vld [vmem:[%s2 + $0x70] sm:$0xff]
    %v1669 = vld [vmem:[%s2 + $0x78] sm:$0xff]
    %v1670 = vld [vmem:[%s2 + $0x80] sm:$0xff]
    %v1671 = vld [vmem:[%s2 + $0x88] sm:$0xff]
    %v1672 = vld [vmem:[%s2 + $0x90] sm:$0xff]
    %v1673 = vld [vmem:[%s2 + $0x98] sm:$0xff]
    %v1674 = vld [vmem:[%s2 + $0xa0] sm:$0xff]
    %v1675 = vld [vmem:[%s2 + $0xa8] sm:$0xff]
    %v1676 = vld [vmem:[%s2 + $0xb0] sm:$0xff]
    %v1677 = vld [vmem:[%s2 + $0xb8] sm:$0xff]
    %v1678 = vld [vmem:[%s2 + $0xc0] sm:$0xff]
    %v1679 = vld [vmem:[%s2 + $0xc8] sm:$0xff]
    %v1680 = vld [vmem:[%s2 + $0xd0] sm:$0xff]
    %v1681 = vld [vmem:[%s2 + $0xd8] sm:$0xff]
    %v1682 = vld [vmem:[%s2 + $0xe0] sm:$0xff]
    %v1683 = vld [vmem:[%s2 + $0xe8] sm:$0xff]
    %v1684 = vld [vmem:[%s2 + $0xf0] sm:$0xff]
    %v1685 = vld [vmem:[%s2 + $0xf8] sm:$0xff]
    %v1686 = vsub.f32 %v1622, %v1654
    %v1687 = vsub.f32 %v1623, %v1655
    %v1688 = vsub.f32 %v1624, %v1656
    %v1689 = vsub.f32 %v1625, %v1657
    %v1690 = vsub.f32 %v1626, %v1658
    %v1691 = vsub.f32 %v1627, %v1659
    %v1692 = vsub.f32 %v1628, %v1660
    %v1693 = vsub.f32 %v1629, %v1661
    %v1694 = vsub.f32 %v1630, %v1662
    %v1695 = vsub.f32 %v1631, %v1663
    %v1696 = vsub.f32 %v1632, %v1664
    %v1697 = vsub.f32 %v1633, %v1665
    %v1698 = vsub.f32 %v1634, %v1666
    %v1699 = vsub.f32 %v1635, %v1667
    %v1700 = vsub.f32 %v1636, %v1668
    %v1701 = vsub.f32 %v1637, %v1669
    %v1702 = vsub.f32 %v1638, %v1670
    %v1703 = vsub.f32 %v1639, %v1671
    %v1704 = vsub.f32 %v1640, %v1672
    %v1705 = vsub.f32 %v1641, %v1673
    %v1706 = vsub.f32 %v1642, %v1674
    %v1707 = vsub.f32 %v1643, %v1675
    %v1708 = vsub.f32 %v1644, %v1676
    %v1709 = vsub.f32 %v1645, %v1677
    %v1710 = vsub.f32 %v1646, %v1678
    %v1711 = vsub.f32 %v1647, %v1679
    %v1712 = vsub.f32 %v1648, %v1680
    %v1713 = vsub.f32 %v1649, %v1681
    %v1714 = vsub.f32 %v1650, %v1682
    %v1715 = vsub.f32 %v1651, %v1683
    %v1716 = vsub.f32 %v1652, %v1684
    %v1717 = vsub.f32 %v1653, %v1685
    %v1718 = vand.u32 2147483647, %v1686
    %v1719 = vand.u32 2147483647, %v1687
    %v1720 = vand.u32 2147483647, %v1688
    %v1721 = vand.u32 2147483647, %v1689
    %v1722 = vand.u32 2147483647, %v1690
    %v1723 = vand.u32 2147483647, %v1691
    %v1724 = vand.u32 2147483647, %v1692
    %v1725 = vand.u32 2147483647, %v1693
    %v1726 = vand.u32 2147483647, %v1694
    %v1727 = vand.u32 2147483647, %v1695
    %v1728 = vand.u32 2147483647, %v1696
    %v1729 = vand.u32 2147483647, %v1697
    %v1730 = vand.u32 2147483647, %v1698
    %v1731 = vand.u32 2147483647, %v1699
    %v1732 = vand.u32 2147483647, %v1700
    %v1733 = vand.u32 2147483647, %v1701
    %v1734 = vand.u32 2147483647, %v1702
    %v1735 = vand.u32 2147483647, %v1703
    %v1736 = vand.u32 2147483647, %v1704
    %v1737 = vand.u32 2147483647, %v1705
    %v1738 = vand.u32 2147483647, %v1706
    %v1739 = vand.u32 2147483647, %v1707
    %v1740 = vand.u32 2147483647, %v1708
    %v1741 = vand.u32 2147483647, %v1709
    %v1742 = vand.u32 2147483647, %v1710
    %v1743 = vand.u32 2147483647, %v1711
    %v1744 = vand.u32 2147483647, %v1712
    %v1745 = vand.u32 2147483647, %v1713
    %v1746 = vand.u32 2147483647, %v1714
    %v1747 = vand.u32 2147483647, %v1715
    %v1748 = vand.u32 2147483647, %v1716
    %v1749 = vand.u32 2147483647, %v1717
    %vm1750 = vcmp.lt.f32.partialorder %v1718, 1.0
    %vm1751 = vcmp.lt.f32.partialorder %v1719, 1.0
    %vm1752 = vcmp.lt.f32.partialorder %v1720, 1.0
    %vm1753 = vcmp.lt.f32.partialorder %v1721, 1.0
    %vm1754 = vcmp.lt.f32.partialorder %v1722, 1.0
    %vm1755 = vcmp.lt.f32.partialorder %v1723, 1.0
    %vm1756 = vcmp.lt.f32.partialorder %v1724, 1.0
    %vm1757 = vcmp.lt.f32.partialorder %v1725, 1.0
    %vm1758 = vcmp.lt.f32.partialorder %v1726, 1.0
    %vm1759 = vcmp.lt.f32.partialorder %v1727, 1.0
    %vm1760 = vcmp.lt.f32.partialorder %v1728, 1.0
    %vm1761 = vcmp.lt.f32.partialorder %v1729, 1.0
    %vm1762 = vcmp.lt.f32.partialorder %v1730, 1.0
    %vm1763 = vcmp.lt.f32.partialorder %v1731, 1.0
    %vm1764 = vcmp.lt.f32.partialorder %v1732, 1.0
    %vm1765 = vcmp.lt.f32.partialorder %v1733, 1.0
    %vm1766 = vcmp.lt.f32.partialorder %v1734, 1.0
    %vm1767 = vcmp.lt.f32.partialorder %v1735, 1.0
    %vm1768 = vcmp.lt.f32.partialorder %v1736, 1.0
    %vm1769 = vcmp.lt.f32.partialorder %v1737, 1.0
    %vm1770 = vcmp.lt.f32.partialorder %v1738, 1.0
    %vm1771 = vcmp.lt.f32.partialorder %v1739, 1.0
    %vm1772 = vcmp.lt.f32.partialorder %v1740, 1.0
    %vm1773 = vcmp.lt.f32.partialorder %v1741, 1.0
    %vm1774 = vcmp.lt.f32.partialorder %v1742, 1.0
    %vm1775 = vcmp.lt.f32.partialorder %v1743, 1.0
    %vm1776 = vcmp.lt.f32.partialorder %v1744, 1.0
    %vm1777 = vcmp.lt.f32.partialorder %v1745, 1.0
    %vm1778 = vcmp.lt.f32.partialorder %v1746, 1.0
    %vm1779 = vcmp.lt.f32.partialorder %v1747, 1.0
    %vm1780 = vcmp.lt.f32.partialorder %v1748, 1.0
    %vm1781 = vcmp.lt.f32.partialorder %v1749, 1.0
    %v1782 = vmul.f32 %v1718, 0.5
    %v1783 = vmul.f32 %v1719, 0.5
    %v1784 = vmul.f32 %v1720, 0.5
    %v1785 = vmul.f32 %v1721, 0.5
    %v1786 = vmul.f32 %v1722, 0.5
    %v1787 = vmul.f32 %v1723, 0.5
    %v1788 = vmul.f32 %v1724, 0.5
    %v1789 = vmul.f32 %v1725, 0.5
    %v1790 = vmul.f32 %v1726, 0.5
    %v1791 = vmul.f32 %v1727, 0.5
    %v1792 = vmul.f32 %v1728, 0.5
    %v1793 = vmul.f32 %v1729, 0.5
    %v1794 = vmul.f32 %v1730, 0.5
    %v1795 = vmul.f32 %v1731, 0.5
    %v1796 = vmul.f32 %v1732, 0.5
    %v1797 = vmul.f32 %v1733, 0.5
    %v1798 = vmul.f32 %v1734, 0.5
    %v1799 = vmul.f32 %v1735, 0.5
    %v1800 = vmul.f32 %v1736, 0.5
    %v1801 = vmul.f32 %v1737, 0.5
    %v1802 = vmul.f32 %v1738, 0.5
    %v1803 = vmul.f32 %v1739, 0.5
    %v1804 = vmul.f32 %v1740, 0.5
    %v1805 = vmul.f32 %v1741, 0.5
    %v1806 = vmul.f32 %v1742, 0.5
    %v1807 = vmul.f32 %v1743, 0.5
    %v1808 = vmul.f32 %v1744, 0.5
    %v1809 = vmul.f32 %v1745, 0.5
    %v1810 = vmul.f32 %v1746, 0.5
    %v1811 = vmul.f32 %v1747, 0.5
    %v1812 = vmul.f32 %v1748, 0.5
    %v1813 = vmul.f32 %v1749, 0.5
    %v1814 = vmul.f32 %v1782, %v1718
    %v1815 = vmul.f32 %v1783, %v1719
    %v1816 = vmul.f32 %v1784, %v1720
    %v1817 = vmul.f32 %v1785, %v1721
    %v1818 = vmul.f32 %v1786, %v1722
    %v1819 = vmul.f32 %v1787, %v1723
    %v1820 = vmul.f32 %v1788, %v1724
    %v1821 = vmul.f32 %v1789, %v1725
    %v1822 = vmul.f32 %v1790, %v1726
    %v1823 = vmul.f32 %v1791, %v1727
    %v1824 = vmul.f32 %v1792, %v1728
    %v1825 = vmul.f32 %v1793, %v1729
    %v1826 = vmul.f32 %v1794, %v1730
    %v1827 = vmul.f32 %v1795, %v1731
    %v1828 = vmul.f32 %v1796, %v1732
    %v1829 = vmul.f32 %v1797, %v1733
    %v1830 = vmul.f32 %v1798, %v1734
    %v1831 = vmul.f32 %v1799, %v1735
    %v1832 = vmul.f32 %v1800, %v1736
    %v1833 = vmul.f32 %v1801, %v1737
    %v1834 = vmul.f32 %v1802, %v1738
    %v1835 = vmul.f32 %v1803, %v1739
    %v1836 = vmul.f32 %v1804, %v1740
    %v1837 = vmul.f32 %v1805, %v1741
    %v1838 = vmul.f32 %v1806, %v1742
    %v1839 = vmul.f32 %v1807, %v1743
    %v1840 = vmul.f32 %v1808, %v1744
    %v1841 = vmul.f32 %v1809, %v1745
    %v1842 = vmul.f32 %v1810, %v1746
    %v1843 = vmul.f32 %v1811, %v1747
    %v1844 = vmul.f32 %v1812, %v1748
    %v1845 = vmul.f32 %v1813, %v1749
    %v1846 = vsub.f32 %v1718, 0.5
    %v1847 = vsub.f32 %v1719, 0.5
    %v1848 = vsub.f32 %v1720, 0.5
    %v1849 = vsub.f32 %v1721, 0.5
    %v1850 = vsub.f32 %v1722, 0.5
    %v1851 = vsub.f32 %v1723, 0.5
    %v1852 = vsub.f32 %v1724, 0.5
    %v1853 = vsub.f32 %v1725, 0.5
    %v1854 = vsub.f32 %v1726, 0.5
    %v1855 = vsub.f32 %v1727, 0.5
    %v1856 = vsub.f32 %v1728, 0.5
    %v1857 = vsub.f32 %v1729, 0.5
    %v1858 = vsub.f32 %v1730, 0.5
    %v1859 = vsub.f32 %v1731, 0.5
    %v1860 = vsub.f32 %v1732, 0.5
    %v1861 = vsub.f32 %v1733, 0.5
    %v1862 = vsub.f32 %v1734, 0.5
    %v1863 = vsub.f32 %v1735, 0.5
    %v1864 = vsub.f32 %v1736, 0.5
    %v1865 = vsub.f32 %v1737, 0.5
    %v1866 = vsub.f32 %v1738, 0.5
    %v1867 = vsub.f32 %v1739, 0.5
    %v1868 = vsub.f32 %v1740, 0.5
    %v1869 = vsub.f32 %v1741, 0.5
    %v1870 = vsub.f32 %v1742, 0.5
    %v1871 = vsub.f32 %v1743, 0.5
    %v1872 = vsub.f32 %v1744, 0.5
    %v1873 = vsub.f32 %v1745, 0.5
    %v1874 = vsub.f32 %v1746, 0.5
    %v1875 = vsub.f32 %v1747, 0.5
    %v1876 = vsub.f32 %v1748, 0.5
    %v1877 = vsub.f32 %v1749, 0.5
    %v1878 = vsel %vm1750, %v1814, %v1846
    %v1879 = vsel %vm1751, %v1815, %v1847
    %v1880 = vsel %vm1752, %v1816, %v1848
    %v1881 = vsel %vm1753, %v1817, %v1849
    %v1882 = vsel %vm1754, %v1818, %v1850
    %v1883 = vsel %vm1755, %v1819, %v1851
    %v1884 = vsel %vm1756, %v1820, %v1852
    %v1885 = vsel %vm1757, %v1821, %v1853
    %v1886 = vsel %vm1758, %v1822, %v1854
    %v1887 = vsel %vm1759, %v1823, %v1855
    %v1888 = vsel %vm1760, %v1824, %v1856
    %v1889 = vsel %vm1761, %v1825, %v1857
    %v1890 = vsel %vm1762, %v1826, %v1858
    %v1891 = vsel %vm1763, %v1827, %v1859
    %v1892 = vsel %vm1764, %v1828, %v1860
    %v1893 = vsel %vm1765, %v1829, %v1861
    %v1894 = vsel %vm1766, %v1830, %v1862
    %v1895 = vsel %vm1767, %v1831, %v1863
    %v1896 = vsel %vm1768, %v1832, %v1864
    %v1897 = vsel %vm1769, %v1833, %v1865
    %v1898 = vsel %vm1770, %v1834, %v1866
    %v1899 = vsel %vm1771, %v1835, %v1867
    %v1900 = vsel %vm1772, %v1836, %v1868
    %v1901 = vsel %vm1773, %v1837, %v1869
    %v1902 = vsel %vm1774, %v1838, %v1870
    %v1903 = vsel %vm1775, %v1839, %v1871
    %v1904 = vsel %vm1776, %v1840, %v1872
    %v1905 = vsel %vm1777, %v1841, %v1873
    %v1906 = vsel %vm1778, %v1842, %v1874
    %v1907 = vsel %vm1779, %v1843, %v1875
    %v1908 = vsel %vm1780, %v1844, %v1876
    %v1909 = vsel %vm1781, %v1845, %v1877
    %v1910 = vsel %vm1590, 1, 0
    %v1911 = vsel %vm1591, 1, 0
    %v1912 = vsel %vm1592, 1, 0
    %v1913 = vsel %vm1593, 1, 0
    %v1914 = vsel %vm1594, 1, 0
    %v1915 = vsel %vm1595, 1, 0
    %v1916 = vsel %vm1596, 1, 0
    %v1917 = vsel %vm1597, 1, 0
    %v1918 = vsel %vm1598, 1, 0
    %v1919 = vsel %vm1599, 1, 0
    %v1920 = vsel %vm1600, 1, 0
    %v1921 = vsel %vm1601, 1, 0
    %v1922 = vsel %vm1602, 1, 0
    %v1923 = vsel %vm1603, 1, 0
    %v1924 = vsel %vm1604, 1, 0
    %v1925 = vsel %vm1605, 1, 0
    %v1926 = vsel %vm1606, 1, 0
    %v1927 = vsel %vm1607, 1, 0
    %v1928 = vsel %vm1608, 1, 0
    %v1929 = vsel %vm1609, 1, 0
    %v1930 = vsel %vm1610, 1, 0
    %v1931 = vsel %vm1611, 1, 0
    %v1932 = vsel %vm1612, 1, 0
    %v1933 = vsel %vm1613, 1, 0
    %v1934 = vsel %vm1614, 1, 0
    %v1935 = vsel %vm1615, 1, 0
    %v1936 = vsel %vm1616, 1, 0
    %v1937 = vsel %vm1617, 1, 0
    %v1938 = vsel %vm1618, 1, 0
    %v1939 = vsel %vm1619, 1, 0
    %v1940 = vsel %vm1620, 1, 0
    %v1941 = vsel %vm1621, 1, 0
    %1942 = vset.pattern.permute.xlu0 0
    %1943 = vperm.xlu0 %1942, %v1910
    %v1944 = vpop.permute.xlu0 %1943
    %1945 = vset.pattern.permute.xlu0 0
    %1946 = vperm.xlu0 %1945, %v1911
    %v1947 = vpop.permute.xlu0 %1946
    %1948 = vset.pattern.permute.xlu0 0
    %1949 = vperm.xlu0 %1948, %v1912
    %v1950 = vpop.permute.xlu0 %1949
    %1951 = vset.pattern.permute.xlu0 0
    %1952 = vperm.xlu0 %1951, %v1913
    %v1953 = vpop.permute.xlu0 %1952
    %1954 = vset.pattern.permute.xlu0 0
    %1955 = vperm.xlu0 %1954, %v1914
    %v1956 = vpop.permute.xlu0 %1955
    %1957 = vset.pattern.permute.xlu0 0
    %1958 = vperm.xlu0 %1957, %v1915
    %v1959 = vpop.permute.xlu0 %1958
    %1960 = vset.pattern.permute.xlu0 0
    %1961 = vperm.xlu0 %1960, %v1916
    %v1962 = vpop.permute.xlu0 %1961
    %1963 = vset.pattern.permute.xlu0 0
    %1964 = vperm.xlu0 %1963, %v1917
    %v1965 = vpop.permute.xlu0 %1964
    %1966 = vset.pattern.permute.xlu0 0
    %1967 = vperm.xlu0 %1966, %v1918
    %v1968 = vpop.permute.xlu0 %1967
    %1969 = vset.pattern.permute.xlu0 0
    %1970 = vperm.xlu0 %1969, %v1919
    %v1971 = vpop.permute.xlu0 %1970
    %1972 = vset.pattern.permute.xlu0 0
    %1973 = vperm.xlu0 %1972, %v1920
    %v1974 = vpop.permute.xlu0 %1973
    %1975 = vset.pattern.permute.xlu0 0
    %1976 = vperm.xlu0 %1975, %v1921
    %v1977 = vpop.permute.xlu0 %1976
    %1978 = vset.pattern.permute.xlu0 0
    %1979 = vperm.xlu0 %1978, %v1922
    %v1980 = vpop.permute.xlu0 %1979
    %1981 = vset.pattern.permute.xlu0 0
    %1982 = vperm.xlu0 %1981, %v1923
    %v1983 = vpop.permute.xlu0 %1982
    %1984 = vset.pattern.permute.xlu0 0
    %1985 = vperm.xlu0 %1984, %v1924
    %v1986 = vpop.permute.xlu0 %1985
    %1987 = vset.pattern.permute.xlu0 0
    %1988 = vperm.xlu0 %1987, %v1925
    %v1989 = vpop.permute.xlu0 %1988
    %1990 = vset.pattern.permute.xlu0 0
    %1991 = vperm.xlu0 %1990, %v1926
    %v1992 = vpop.permute.xlu0 %1991
    %1993 = vset.pattern.permute.xlu0 0
    %1994 = vperm.xlu0 %1993, %v1927
    %v1995 = vpop.permute.xlu0 %1994
    %1996 = vset.pattern.permute.xlu0 0
    %1997 = vperm.xlu0 %1996, %v1928
    %v1998 = vpop.permute.xlu0 %1997
    %1999 = vset.pattern.permute.xlu0 0
    %2000 = vperm.xlu0 %1999, %v1929
    %v2001 = vpop.permute.xlu0 %2000
    %2002 = vset.pattern.permute.xlu0 0
    %2003 = vperm.xlu0 %2002, %v1930
    %v2004 = vpop.permute.xlu0 %2003
    %2005 = vset.pattern.permute.xlu0 0
    %2006 = vperm.xlu0 %2005, %v1931
    %v2007 = vpop.permute.xlu0 %2006
    %2008 = vset.pattern.permute.xlu0 0
    %2009 = vperm.xlu0 %2008, %v1932
    %v2010 = vpop.permute.xlu0 %2009
    %2011 = vset.pattern.permute.xlu0 0
    %2012 = vperm.xlu0 %2011, %v1933
    %v2013 = vpop.permute.xlu0 %2012
    %2014 = vset.pattern.permute.xlu0 0
    %2015 = vperm.xlu0 %2014, %v1934
    %v2016 = vpop.permute.xlu0 %2015
    %2017 = vset.pattern.permute.xlu0 0
    %2018 = vperm.xlu0 %2017, %v1935
    %v2019 = vpop.permute.xlu0 %2018
    %2020 = vset.pattern.permute.xlu0 0
    %2021 = vperm.xlu0 %2020, %v1936
    %v2022 = vpop.permute.xlu0 %2021
    %2023 = vset.pattern.permute.xlu0 0
    %2024 = vperm.xlu0 %2023, %v1937
    %v2025 = vpop.permute.xlu0 %2024
    %2026 = vset.pattern.permute.xlu0 0
    %2027 = vperm.xlu0 %2026, %v1938
    %v2028 = vpop.permute.xlu0 %2027
    %2029 = vset.pattern.permute.xlu0 0
    %2030 = vperm.xlu0 %2029, %v1939
    %v2031 = vpop.permute.xlu0 %2030
    %2032 = vset.pattern.permute.xlu0 0
    %2033 = vperm.xlu0 %2032, %v1940
    %v2034 = vpop.permute.xlu0 %2033
    %2035 = vset.pattern.permute.xlu0 0
    %2036 = vperm.xlu0 %2035, %v1941
    %v2037 = vpop.permute.xlu0 %2036
    %vm2038 = vcmp.eq.s32.totalorder %v1944, 1
    %vm2039 = vcmp.eq.s32.totalorder %v1947, 1
    %vm2040 = vcmp.eq.s32.totalorder %v1950, 1
    %vm2041 = vcmp.eq.s32.totalorder %v1953, 1
    %vm2042 = vcmp.eq.s32.totalorder %v1956, 1
    %vm2043 = vcmp.eq.s32.totalorder %v1959, 1
    %vm2044 = vcmp.eq.s32.totalorder %v1962, 1
    %vm2045 = vcmp.eq.s32.totalorder %v1965, 1
    %vm2046 = vcmp.eq.s32.totalorder %v1968, 1
    %vm2047 = vcmp.eq.s32.totalorder %v1971, 1
    %vm2048 = vcmp.eq.s32.totalorder %v1974, 1
    %vm2049 = vcmp.eq.s32.totalorder %v1977, 1
    %vm2050 = vcmp.eq.s32.totalorder %v1980, 1
    %vm2051 = vcmp.eq.s32.totalorder %v1983, 1
    %vm2052 = vcmp.eq.s32.totalorder %v1986, 1
    %vm2053 = vcmp.eq.s32.totalorder %v1989, 1
    %vm2054 = vcmp.eq.s32.totalorder %v1992, 1
    %vm2055 = vcmp.eq.s32.totalorder %v1995, 1
    %vm2056 = vcmp.eq.s32.totalorder %v1998, 1
    %vm2057 = vcmp.eq.s32.totalorder %v2001, 1
    %vm2058 = vcmp.eq.s32.totalorder %v2004, 1
    %vm2059 = vcmp.eq.s32.totalorder %v2007, 1
    %vm2060 = vcmp.eq.s32.totalorder %v2010, 1
    %vm2061 = vcmp.eq.s32.totalorder %v2013, 1
    %vm2062 = vcmp.eq.s32.totalorder %v2016, 1
    %vm2063 = vcmp.eq.s32.totalorder %v2019, 1
    %vm2064 = vcmp.eq.s32.totalorder %v2022, 1
    %vm2065 = vcmp.eq.s32.totalorder %v2025, 1
    %vm2066 = vcmp.eq.s32.totalorder %v2028, 1
    %vm2067 = vcmp.eq.s32.totalorder %v2031, 1
    %vm2068 = vcmp.eq.s32.totalorder %v2034, 1
    %vm2069 = vcmp.eq.s32.totalorder %v2037, 1
    %v2070 = vsel %vm2038, %v1878, 0.0
    %v2071 = vsel %vm2039, %v1879, 0.0
    %v2072 = vsel %vm2040, %v1880, 0.0
    %v2073 = vsel %vm2041, %v1881, 0.0
    %v2074 = vsel %vm2042, %v1882, 0.0
    %v2075 = vsel %vm2043, %v1883, 0.0
    %v2076 = vsel %vm2044, %v1884, 0.0
    %v2077 = vsel %vm2045, %v1885, 0.0
    %v2078 = vsel %vm2046, %v1886, 0.0
    %v2079 = vsel %vm2047, %v1887, 0.0
    %v2080 = vsel %vm2048, %v1888, 0.0
    %v2081 = vsel %vm2049, %v1889, 0.0
    %v2082 = vsel %vm2050, %v1890, 0.0
    %v2083 = vsel %vm2051, %v1891, 0.0
    %v2084 = vsel %vm2052, %v1892, 0.0
    %v2085 = vsel %vm2053, %v1893, 0.0
    %v2086 = vsel %vm2054, %v1894, 0.0
    %v2087 = vsel %vm2055, %v1895, 0.0
    %v2088 = vsel %vm2056, %v1896, 0.0
    %v2089 = vsel %vm2057, %v1897, 0.0
    %v2090 = vsel %vm2058, %v1898, 0.0
    %v2091 = vsel %vm2059, %v1899, 0.0
    %v2092 = vsel %vm2060, %v1900, 0.0
    %v2093 = vsel %vm2061, %v1901, 0.0
    %v2094 = vsel %vm2062, %v1902, 0.0
    %v2095 = vsel %vm2063, %v1903, 0.0
    %v2096 = vsel %vm2064, %v1904, 0.0
    %v2097 = vsel %vm2065, %v1905, 0.0
    %v2098 = vsel %vm2066, %v1906, 0.0
    %v2099 = vsel %vm2067, %v1907, 0.0
    %v2100 = vsel %vm2068, %v1908, 0.0
    %v2101 = vsel %vm2069, %v1909, 0.0
    %vm2102 = vcmask 31744
    %v2103 = vsel %vm2102, %v2070, 0.0
    %v2104 = vsel %vm2102, %v2071, 0.0
    %v2105 = vadd.f32 %v2103, %v2104
    %v2106 = vsel %vm2102, %v2072, 0.0
    %v2107 = vadd.f32 %v2105, %v2106
    %v2108 = vsel %vm2102, %v2073, 0.0
    %v2109 = vadd.f32 %v2107, %v2108
    %v2110 = vsel %vm2102, %v2074, 0.0
    %v2111 = vadd.f32 %v2109, %v2110
    %v2112 = vsel %vm2102, %v2075, 0.0
    %v2113 = vadd.f32 %v2111, %v2112
    %v2114 = vsel %vm2102, %v2076, 0.0
    %v2115 = vadd.f32 %v2113, %v2114
    %v2116 = vsel %vm2102, %v2077, 0.0
    %v2117 = vadd.f32 %v2115, %v2116
    %v2118 = vsel %vm2102, %v2078, 0.0
    %v2119 = vadd.f32 %v2117, %v2118
    %v2120 = vsel %vm2102, %v2079, 0.0
    %v2121 = vadd.f32 %v2119, %v2120
    %v2122 = vsel %vm2102, %v2080, 0.0
    %v2123 = vadd.f32 %v2121, %v2122
    %v2124 = vsel %vm2102, %v2081, 0.0
    %v2125 = vadd.f32 %v2123, %v2124
    %v2126 = vsel %vm2102, %v2082, 0.0
    %v2127 = vadd.f32 %v2125, %v2126
    %v2128 = vsel %vm2102, %v2083, 0.0
    %v2129 = vadd.f32 %v2127, %v2128
    %v2130 = vsel %vm2102, %v2084, 0.0
    %v2131 = vadd.f32 %v2129, %v2130
    %v2132 = vsel %vm2102, %v2085, 0.0
    %v2133 = vadd.f32 %v2131, %v2132
    %v2134 = vsel %vm2102, %v2086, 0.0
    %v2135 = vadd.f32 %v2133, %v2134
    %v2136 = vsel %vm2102, %v2087, 0.0
    %v2137 = vadd.f32 %v2135, %v2136
    %v2138 = vsel %vm2102, %v2088, 0.0
    %v2139 = vadd.f32 %v2137, %v2138
    %v2140 = vsel %vm2102, %v2089, 0.0
    %v2141 = vadd.f32 %v2139, %v2140
    %v2142 = vsel %vm2102, %v2090, 0.0
    %v2143 = vadd.f32 %v2141, %v2142
    %v2144 = vsel %vm2102, %v2091, 0.0
    %v2145 = vadd.f32 %v2143, %v2144
    %v2146 = vsel %vm2102, %v2092, 0.0
    %v2147 = vadd.f32 %v2145, %v2146
    %v2148 = vsel %vm2102, %v2093, 0.0
    %v2149 = vadd.f32 %v2147, %v2148
    %v2150 = vsel %vm2102, %v2094, 0.0
    %v2151 = vadd.f32 %v2149, %v2150
    %v2152 = vsel %vm2102, %v2095, 0.0
    %v2153 = vadd.f32 %v2151, %v2152
    %v2154 = vsel %vm2102, %v2096, 0.0
    %v2155 = vadd.f32 %v2153, %v2154
    %v2156 = vsel %vm2102, %v2097, 0.0
    %v2157 = vadd.f32 %v2155, %v2156
    %v2158 = vsel %vm2102, %v2098, 0.0
    %v2159 = vadd.f32 %v2157, %v2158
    %v2160 = vsel %vm2102, %v2099, 0.0
    %v2161 = vadd.f32 %v2159, %v2160
    %v2162 = vsel %vm2102, %v2100, 0.0
    %v2163 = vadd.f32 %v2161, %v2162
    %v2164 = vsel %vm2102, %v2101, 0.0
    %v2165 = vadd.f32 %v2163, %v2164
    %2166 = vadd.xlane.f32.xlu0 %v2165
    %v2167 = vpop.xlane.xlu0 %2166
    %v2168 = vrot.slane %v2167, 4
    %v2169 = vadd.f32 %v2167, %v2168
    %v2170 = vrot.slane %v2169, 2
    %v2171 = vadd.f32 %v2169, %v2170
    %v2172 = vrot.slane %v2171, 1
    %v2173 = vadd.f32 %v2171, %v2172
    %s2174 = vtos %v2173
    %v2175 = vsel %vm194, %v207, 0
    %v2176 = vsel %vm194, %v220, 0
    %v2177 = vadd.s32 %v2175, %v2176
    %v2178 = vrot.slane %v2177, 4
    %v2179 = vadd.s32 %v2177, %v2178
    %v2180 = vrot.slane %v2179, 2
    %v2181 = vadd.s32 %v2179, %v2180
    %v2182 = vrot.slane %v2181, 1
    %v2183 = vadd.s32 %v2181, %v2182
    %s2184 = vtos %v2183
    %s2185 = scvt.s32.f32 %s2184
    %vm2186 = vcmp.eq.s32.totalorder %v186, 0
    %v2187 = vstv %s2174
    %v2188 = vsel %vm2186, %v2187, 0.0
    %vm2189 = vcmp.eq.s32.totalorder %v186, 1
    %v2190 = vstv %s1557
    %v2191 = vsel %vm2189, %v2190, 0.0
    %v2192 = vadd.f32 %v2188, %v2191
    %vm2193 = vcmp.eq.s32.totalorder %v186, 2
    %v2194 = vstv %s2185
    %v2195 = vsel %vm2193, %v2194, 0.0
    %v2196 = vadd.f32 %v2192, %v2195
    %2197 = vst [vmem:[#allocation2] sm:$0x1] %v2196
    // Predicated region
    $region22: #{tpu_custom_call.1} parent=1 // pred_check
      _
    $region23: #{tpu_custom_call.1} parent=1 // pred_check_branch
      %2199 = sbr.rel (0) target = $region25
    $region24: #{tpu_custom_call.1} parent=1 // pred_region
      %s2201 = ssub.s32 16, 16
      %2202 = vsyncadd [#allocation3], %s2201
      %s2204 = sshll.u32 [#allocation2], 4
      %s2205 = int_to_ptr.vmem [resolvable:$true] %s2204
      %2207 = dma.vmem_to_hbm [thread:$0]  %s2205, 16, %s5, [#allocation3]
    $region25: #{tpu_custom_call.1} parent=1 // pred_fallthru
      _
    // Predicated region
    $region26: #{tpu_custom_call.1} parent=1 // pred_check
      _
    $region27: #{tpu_custom_call.1} parent=1 // pred_check_branch
      %2209 = sbr.rel (0) target = $region29
    $region28: #{tpu_custom_call.1} parent=1 // pred_region
      %2210 = dma.done [#allocation3], 16
    $region29: #{tpu_custom_call.1} parent=1 // pred_fallthru
      _
    %2211 = vsyncpa [#allocation3], 1

</llo_original>
